<compile_context>
chip_gen: v6e
topology: v6e:2x2x1
jax: 0.10.0
libtpu: 0.0.40
codegen_flags: <defaults>
</compile_context>

<pallas_src>
import functools

import jax
import jax.numpy as jnp
from jax.experimental import pallas as pl
from jax.experimental.pallas import tpu as pltpu


def _round_up(x, m):
    return (x + m - 1) // m * m


# ----------------------------- fused kernel -----------------------------

def _decoder_seq_kernel(num_layers, h_pad,
                        x_ref,      # (1, Bp, Hp)   bf16  gathered embeddings, this step
                        wih_ref,    # (L, Hp, 3Hp)  bf16  W_ih^T, per-gate padded (resident)
                        whh_ref,    # (L, Hp, 3Hp)  bf16  W_hh^T, per-gate padded (resident)
                        bi_ref,     # (L, 1, 3Hp)   f32
                        bh_ref,     # (L, 1, 3Hp)   f32
                        wout_ref,   # (Hp, Vp)      bf16  (resident)
                        bout_ref,   # (1, Vp)       f32   (-1e30 on padded vocab cols)
                        hid0_ref,   # (L, Bp, Hp)   f32   initial hidden (resident)
                        logp_ref,   # (1, Bp, Vp)   f32   out: log-probs for this step
                        hid_ref):   # (L, Bp, Hp)   f32   out: hidden, VMEM-resident over T
    Hp = h_pad
    t = pl.program_id(0)

    # Seed the persistent hidden state once, before the first step.
    @pl.when(t == 0)
    def _():
        hid_ref[...] = hid0_ref[...]

    # --- nn.Embedding(max_norm=1) renorm + ReLU (padded cols are zero) ---
    e = x_ref[0].astype(jnp.float32)                             # (Bp, Hp)
    norm = jnp.sqrt(jnp.sum(e * e, axis=-1, keepdims=True))
    inv = pl.reciprocal(norm + 1e-7, approx=True)                # EUP slot
    x = jnp.maximum(e * jnp.where(norm > 1.0, inv, 1.0), 0.0)

    # --- stacked GRU layers: two dense MXU matmuls per layer, lane-aligned gates ---
    for l in range(num_layers):
        h = hid_ref[l]                                           # (Bp, Hp) f32, read-before-write
        gi = jnp.dot(x.astype(jnp.bfloat16), wih_ref[l],
                     preferred_element_type=jnp.float32) + bi_ref[l]
        gh = jnp.dot(h.astype(jnp.bfloat16), whh_ref[l],
                     preferred_element_type=jnp.float32) + bh_ref[l]
        r = jax.nn.sigmoid(gi[:, 0:Hp] + gh[:, 0:Hp])
        z = jax.nn.sigmoid(gi[:, Hp:2 * Hp] + gh[:, Hp:2 * Hp])
        n = jnp.tanh(gi[:, 2 * Hp:3 * Hp] + r * gh[:, 2 * Hp:3 * Hp])
        h_new = (1.0 - z) * n + z * h
        hid_ref[l] = h_new                                       # recurrent state stays in VMEM
        x = h_new

    # --- output Linear + LogSoftmax (padded vocab columns carry a -1e30 bias) ---
    logits = jnp.dot(x.astype(jnp.bfloat16), wout_ref[...],
                     preferred_element_type=jnp.float32) + bout_ref[...]
    m = jnp.max(logits, axis=-1, keepdims=True)
    s = logits - m
    logp_ref[0] = s - jnp.log(jnp.sum(jnp.exp(s), axis=-1, keepdims=True))


# ----------------------- one-time parameter prep -----------------------

def prepare_decoder_params(params, batch, wdtype=jnp.bfloat16):
    """Pre-transpose, per-gate pad, stack and bf16-cast all decoder weights."""
    f32 = jnp.float32
    emb = params["embedding"].astype(f32)
    V, E = emb.shape
    H = params["w_hh"][0].shape[1]
    L = len(params["w_ih"])

    Hp = _round_up(max(E, H), 128)          # unified feature width for x and h
    Vp = _round_up(V, 128)
    Bp = _round_up(max(batch, 16), 16)      # 16-row tiles: clean for bf16 and f32

    emb_pad = jnp.zeros((V, Hp), f32).at[:, :E].set(emb).astype(wdtype)

    wih, whh, bi, bh = [], [], [], []
    for l in range(L):
        w_ih = params["w_ih"][l].astype(f32)    # (3H, In)
        w_hh = params["w_hh"][l].astype(f32)    # (3H, H)
        b_ih = params["b_ih"][l].astype(f32)    # (3H,)
        b_hh = params["b_hh"][l].astype(f32)    # (3H,)
        In = w_ih.shape[1]
        wi = jnp.zeros((Hp, 3 * Hp), f32)
        wh = jnp.zeros((Hp, 3 * Hp), f32)
        vi = jnp.zeros((1, 3 * Hp), f32)
        vh = jnp.zeros((1, 3 * Hp), f32)
        for g in range(3):                      # gate order: r, z, n (PyTorch layout)
            wi = wi.at[:In, g * Hp:g * Hp + H].set(w_ih[g * H:(g + 1) * H, :].T)
            wh = wh.at[:H, g * Hp:g * Hp + H].set(w_hh[g * H:(g + 1) * H, :].T)
            vi = vi.at[0, g * Hp:g * Hp + H].set(b_ih[g * H:(g + 1) * H])
            vh = vh.at[0, g * Hp:g * Hp + H].set(b_hh[g * H:(g + 1) * H])
        wih.append(wi); whh.append(wh); bi.append(vi); bh.append(vh)

    w_out_t = (jnp.zeros((Hp, Vp), f32)
               .at[:H, :V].set(params["w_out"].astype(f32).T).astype(wdtype))
    b_out = jnp.full((1, Vp), -1e30, f32).at[0, :V].set(params["b_out"].astype(f32))

    return {
        "emb": emb_pad,                          # (V, Hp)      wdtype
        "wih": jnp.stack(wih).astype(wdtype),    # (L, Hp, 3Hp) wdtype
        "whh": jnp.stack(whh).astype(wdtype),    # (L, Hp, 3Hp) wdtype
        "bi": jnp.stack(bi),                     # (L, 1, 3Hp)  f32
        "bh": jnp.stack(bh),                     # (L, 1, 3Hp)  f32
        "wout": w_out_t,                         # (Hp, Vp)     wdtype
        "bout": b_out,                           # (1, Vp)      f32
        "L": L, "V": V, "E": E, "H": H, "Bp": Bp, "Hp": Hp, "Vp": Vp,
    }


# ----------------------------- forward pass -----------------------------

def rnn_de_forward_seq(prep, tokens_seq, hidden):
    """Fused teacher-forced decode: T RNN_de.forward steps in ONE pallas_call.

    tokens_seq: (T, B) int32, hidden: (L, B, H) f32
    returns: log_probs (T, B, V) f32, final hidden (L, B, H) f32
    """
    T, B = tokens_seq.shape
    L, _, H = hidden.shape
    Bp, Hp, Vp, V = prep["Bp"], prep["Hp"], prep["Vp"], prep["V"]

    # Embedding gather hoisted out of the kernel; renorm + ReLU stay in-kernel.
    gathered = jnp.take(prep["emb"], tokens_seq.astype(jnp.int32), axis=0)  # (T,B,Hp)
    x_emb = jnp.zeros((T, Bp, Hp), prep["emb"].dtype).at[:, :B, :].set(gathered)

    hid_pad = jnp.zeros((L, Bp, Hp), jnp.float32).at[:, :B, :H].set(
        hidden.astype(jnp.float32))

    operands = (x_emb, prep["wih"], prep["whh"], prep["bi"], prep["bh"],
                prep["wout"], prep["bout"], hid_pad)

    # Resident VMEM footprint: weights + biases + hidden in/out (fetched once)
    # plus double-buffered per-step x / log-prob blocks.  Cap at 48 MiB (v7x).
    resident = sum(int(a.size) * a.dtype.itemsize for a in operands[1:])
    resident += int(hid_pad.size) * 4                 # hidden output block
    resident += 2 * Bp * Hp * x_emb.dtype.itemsize    # x double buffer
    resident += 2 * Bp * Vp * 4                       # logp double buffer
    vmem_limit = int(min(max(2 * resident, 4 << 20), 48 << 20))

    flops = T * (L * 2 * (2 * Bp * Hp * 3 * Hp) + 2 * Bp * Hp * Vp)
    transc = T * Bp * (L * 3 * Hp + Vp + Hp + 2)
    bytes_accessed = (sum(int(a.size) * a.dtype.itemsize for a in operands)
                      + 4 * (T * Bp * Vp + L * Bp * Hp))

    full3 = lambda t: (0, 0, 0)
    full2 = lambda t: (0, 0)

    logp_pad, hid_new_pad = pl.pallas_call(
        functools.partial(_decoder_seq_kernel, L, Hp),
        out_shape=(
            jax.ShapeDtypeStruct((T, Bp, Vp), jnp.float32),
            jax.ShapeDtypeStruct((L, Bp, Hp), jnp.float32),
        ),
        grid_spec=pltpu.PrefetchScalarGridSpec(
            num_scalar_prefetch=0,
            grid=(T,),
            in_specs=[
                pl.BlockSpec((1, Bp, Hp), lambda t: (t, 0, 0)),      # x_emb step t
                pl.BlockSpec((L, Hp, 3 * Hp), full3),                # W_ih^T (resident)
                pl.BlockSpec((L, Hp, 3 * Hp), full3),                # W_hh^T (resident)
                pl.BlockSpec((L, 1, 3 * Hp), full3),                 # b_ih
                pl.BlockSpec((L, 1, 3 * Hp), full3),                 # b_hh
                pl.BlockSpec((Hp, Vp), full2),                       # W_out^T (resident)
                pl.BlockSpec((1, Vp), full2),                        # b_out
                pl.BlockSpec((L, Bp, Hp), full3),                    # initial hidden
            ],
            out_specs=(
                pl.BlockSpec((1, Bp, Vp), lambda t: (t, 0, 0)),      # log-probs step t
                pl.BlockSpec((L, Bp, Hp), full3),                    # hidden (resident)
            ),
        ),
        compiler_params=pltpu.CompilerParams(
            dimension_semantics=("arbitrary",),      # sequential recurrence over T
            vmem_limit_bytes=vmem_limit,
        ),
        cost_estimate=pl.CostEstimate(
            flops=flops, transcendentals=transc, bytes_accessed=bytes_accessed),
    )(*operands)

    return logp_pad[:, :B, :V], hid_new_pad[:, :B, :H]


def rnn_de_forward(prep, tokens, hidden):
    """RNN_de.forward: (tokens (B,), hidden (L,B,H)) -> (log_probs (1,B,V), new hidden)."""
    logp, new_hidden = rnn_de_forward_seq(prep, tokens[None, :], hidden)
    return logp, new_hidden        # T=1, so logp already has the leading seq dim


# -------------------------- pure-JAX reference --------------------------

def ref_forward(params, tokens, hidden):
    e = jnp.take(params["embedding"], tokens, axis=0)
    norm = jnp.sqrt(jnp.sum(e * e, axis=-1, keepdims=True))
    scale = jnp.where(norm > 1.0, 1.0 / (norm + 1e-7), 1.0)
    x = jnp.maximum(e * scale, 0.0)
    H = hidden.shape[-1]
    new_h = []
    for l in range(len(params["w_ih"])):
        h = hidden[l]
        gi = x @ params["w_ih"][l].T + params["b_ih"][l]
        gh = h @ params["w_hh"][l].T + params["b_hh"][l]
        r = jax.nn.sigmoid(gi[:, :H] + gh[:, :H])
        z = jax.nn.sigmoid(gi[:, H:2 * H] + gh[:, H:2 * H])
        n = jnp.tanh(gi[:, 2 * H:] + r * gh[:, 2 * H:])
        hn = (1.0 - z) * n + z * h
        new_h.append(hn)
        x = hn
    logits = x @ params["w_out"].T + params["b_out"]
    return jax.nn.log_softmax(logits, axis=-1)[None], jnp.stack(new_h, axis=0)


# -------------------------- parameter init --------------------------

def init_params(key, vocab, embed, hidden, num_layer):
    keys = jax.random.split(key, 4 + 4 * num_layer)
    k = iter(keys)
    bound = 1.0 / jnp.sqrt(hidden)
    params = {
        "embedding": jax.random.normal(next(k), (vocab, embed), jnp.float32),
        "w_ih": [], "w_hh": [], "b_ih": [], "b_hh": [],
    }
    for l in range(num_layer):
        in_sz = embed if l == 0 else hidden
        params["w_ih"].append(jax.random.uniform(next(k), (3 * hidden, in_sz),
                                                 jnp.float32, -bound, bound))
        params["w_hh"].append(jax.random.uniform(next(k), (3 * hidden, hidden),
                                                 jnp.float32, -bound, bound))
        params["b_ih"].append(jax.random.uniform(next(k), (3 * hidden,),
                                                 jnp.float32, -bound, bound))
        params["b_hh"].append(jax.random.uniform(next(k), (3 * hidden,),
                                                 jnp.float32, -bound, bound))
    lb = 1.0 / jnp.sqrt(hidden)
    params["w_out"] = jax.random.uniform(next(k), (vocab, hidden), jnp.float32, -lb, lb)
    params["b_out"] = jax.random.uniform(next(k), (vocab,), jnp.float32, -lb, lb)
    return params


# -------------------------------- main --------------------------------

if __name__ == "__main__":
    VOCAB, EMBED, HIDDEN, NUM_LAYER, BATCH = 32, 16, 32, 2, 4

    root = jax.random.PRNGKey(0)
    k_par, k_tok, k_hid = jax.random.split(root, 3)

    params = init_params(k_par, VOCAB, EMBED, HIDDEN, NUM_LAYER)
    tokens = jax.random.randint(k_tok, (BATCH,), 0, VOCAB, dtype=jnp.int32)
    hidden = jax.random.normal(k_hid, (NUM_LAYER, BATCH, HIDDEN), jnp.float32)

    prep = prepare_decoder_params(params, BATCH)      # bf16 weights, f32 biases/mask
    fwd_step = jax.jit(functools.partial(rnn_de_forward, prep))
    fwd_seq = jax.jit(functools.partial(rnn_de_forward_seq, prep))

    # --- single RNN_de.forward step ---
    out, new_hidden = fwd_step(tokens, hidden)
    jax.block_until_ready((out, new_hidden))

    ref_out, ref_hidden = ref_forward(params, tokens, hidden)
    assert out.shape == (1, BATCH, VOCAB)
    assert new_hidden.shape == (NUM_LAYER, BATCH, HIDDEN)
    assert jnp.allclose(out, ref_out, atol=5e-2, rtol=2e-2)
    assert jnp.allclose(new_hidden, ref_hidden, atol=5e-2, rtol=2e-2)

    # --- teacher-forced decode: T steps fused into ONE pallas_call ---
    T = 4
    steps = jax.random.randint(jax.random.PRNGKey(7), (T, BATCH), 0, VOCAB, dtype=jnp.int32)
    lp_seq, h_seq = fwd_seq(steps, hidden)
    jax.block_until_ready((lp_seq, h_seq))
    assert lp_seq.shape == (T, BATCH, VOCAB)
    assert h_seq.shape == (NUM_LAYER, BATCH, HIDDEN)

    h_ref = hidden
    for t in range(T):
        lp_ref, h_ref = ref_forward(params, steps[t], h_ref)
        assert jnp.allclose(lp_seq[t], lp_ref[0], atol=1e-1, rtol=2e-2)
    assert jnp.allclose(h_seq, h_ref, atol=1e-1, rtol=2e-2)

    print("KERNEL_OK")
</pallas_src>

<mosaic_0001>
module attributes {stable_mosaic.version = 11 : i64} {
  func.func @_decoder_seq_kernel(%arg0: i32, %arg1: memref<1x16x128xbf16, #tpu.memory_space<vmem>>, %arg2: memref<2x128x384xbf16, #tpu.memory_space<vmem>>, %arg3: memref<2x128x384xbf16, #tpu.memory_space<vmem>>, %arg4: memref<2x1x384xf32, #tpu.memory_space<vmem>>, %arg5: memref<2x1x384xf32, #tpu.memory_space<vmem>>, %arg6: memref<128x128xbf16, #tpu.memory_space<vmem>>, %arg7: memref<1x128xf32, #tpu.memory_space<vmem>>, %arg8: memref<2x16x128xf32, #tpu.memory_space<vmem>>, %arg9: memref<1x16x128xf32, #tpu.memory_space<vmem>>, %arg10: memref<2x16x128xf32, #tpu.memory_space<vmem>>) attributes {dimension_semantics = [#tpu.dimension_semantics<arbitrary>], iteration_bounds = array<i64: 1>, scalar_prefetch = 0 : i64, scratch_operands = 0 : i64, tpu.core_type = #tpu.core_type<tc>, window_params = [{transform_indices = @transform_0, window_bounds = array<i64: 1, 16, 128>}, {pipeline_mode = #tpu.pipeline_mode<synchronous>, transform_indices = @transform_1, window_bounds = array<i64: 2, 128, 384>}, {pipeline_mode = #tpu.pipeline_mode<synchronous>, transform_indices = @transform_2, window_bounds = array<i64: 2, 128, 384>}, {pipeline_mode = #tpu.pipeline_mode<synchronous>, transform_indices = @transform_3, window_bounds = array<i64: 2, 1, 384>}, {pipeline_mode = #tpu.pipeline_mode<synchronous>, transform_indices = @transform_4, window_bounds = array<i64: 2, 1, 384>}, {pipeline_mode = #tpu.pipeline_mode<synchronous>, transform_indices = @transform_5, window_bounds = array<i64: 128, 128>}, {pipeline_mode = #tpu.pipeline_mode<synchronous>, transform_indices = @transform_6, window_bounds = array<i64: 1, 128>}, {pipeline_mode = #tpu.pipeline_mode<synchronous>, transform_indices = @transform_7, window_bounds = array<i64: 2, 16, 128>}, {transform_indices = @transform_8, window_bounds = array<i64: 1, 16, 128>}, {pipeline_mode = #tpu.pipeline_mode<synchronous>, transform_indices = @transform_9, window_bounds = array<i64: 2, 16, 128>}]} {
    %c0_i32 = arith.constant 0 : i32
    %0 = arith.cmpi eq, %arg0, %c0_i32 : i32
    %1 = arith.extui %0 : i1 to i32
    %c0_i32_0 = arith.constant 0 : i32
    %2 = arith.cmpi ne, %1, %c0_i32_0 : i32
    scf.if %2 {
      %c0_62 = arith.constant 0 : index
      %c0_63 = arith.constant 0 : index
      %c0_64 = arith.constant 0 : index
      %134 = vector.load %arg8[%c0_62, %c0_63, %c0_64] : memref<2x16x128xf32, #tpu.memory_space<vmem>>, vector<2x16x128xf32>
      %c0_65 = arith.constant 0 : index
      %c0_66 = arith.constant 0 : index
      %c0_67 = arith.constant 0 : index
      %135 = vector.load %arg10[%c0_65, %c0_66, %c0_67] : memref<2x16x128xf32, #tpu.memory_space<vmem>>, vector<2x16x128xf32>
      tpu.vector_store %arg10[%c0_65, %c0_66, %c0_67], %134 {strides = array<i32>} : memref<2x16x128xf32, #tpu.memory_space<vmem>>, vector<2x16x128xf32>,
    } else {
    }
    %c0 = arith.constant 0 : index
    %c0_1 = arith.constant 0 : index
    %c0_2 = arith.constant 0 : index
    %3 = vector.load %arg1[%c0, %c0_1, %c0_2] : memref<1x16x128xbf16, #tpu.memory_space<vmem>>, vector<1x16x128xbf16>
    %4 = vector.shape_cast %3 : vector<1x16x128xbf16> to vector<16x128xbf16>
    %5 = arith.extf %4 : vector<16x128xbf16> to vector<16x128xf32>
    %6 = arith.mulf %5, %5 : vector<16x128xf32>
    %cst = arith.constant dense<0.000000e+00> : vector<16xf32>
    %7 = vector.multi_reduction <add>, %6, %cst [1] : vector<16x128xf32> to vector<16xf32>
    %8 = vector.shape_cast %7 : vector<16xf32> to vector<16x1xf32>
    %9 = math.sqrt %8 : vector<16x1xf32>
    %cst_3 = arith.constant 1.000000e-07 : f32
    %10 = vector.broadcast %cst_3 : f32 to vector<16x1xf32>
    %11 = arith.addf %9, %10 : vector<16x1xf32>
    %12 = tpu.reciprocal %11 {approx = true} : vector<16x1xf32> -> vector<16x1xf32>
    %cst_4 = arith.constant 1.000000e+00 : f32
    %13 = vector.broadcast %cst_4 : f32 to vector<16x1xf32>
    %14 = arith.cmpf ogt, %9, %13 : vector<16x1xf32>
    %cst_5 = arith.constant 1.000000e+00 : f32
    %15 = vector.broadcast %cst_5 : f32 to vector<16x1xf32>
    %16 = arith.select %14, %12, %15 : vector<16x1xi1>, vector<16x1xf32>
    %17 = vector.broadcast %16 : vector<16x1xf32> to vector<16x128xf32>
    %18 = arith.mulf %5, %17 : vector<16x128xf32>
    %cst_6 = arith.constant 0.000000e+00 : f32
    %19 = vector.broadcast %cst_6 : f32 to vector<16x128xf32>
    %20 = arith.maximumf %18, %19 : vector<16x128xf32>
    %c0_7 = arith.constant 0 : index
    %c0_8 = arith.constant 0 : index
    %c0_9 = arith.constant 0 : index
    %21 = vector.load %arg10[%c0_7, %c0_8, %c0_9] : memref<2x16x128xf32, #tpu.memory_space<vmem>>, vector<1x16x128xf32>
    %22 = vector.shape_cast %21 : vector<1x16x128xf32> to vector<16x128xf32>
    %23 = arith.truncf %20 : vector<16x128xf32> to vector<16x128xbf16>
    %c0_10 = arith.constant 0 : index
    %c0_11 = arith.constant 0 : index
    %c0_12 = arith.constant 0 : index
    %24 = vector.load %arg2[%c0_10, %c0_11, %c0_12] : memref<2x128x384xbf16, #tpu.memory_space<vmem>>, vector<1x128x384xbf16>
    %25 = vector.shape_cast %24 : vector<1x128x384xbf16> to vector<128x384xbf16>
    %cst_13 = arith.constant dense<0.000000e+00> : vector<16x384xf32>
    %26 = tpu.matmul %23, %25, %cst_13 {dimension_numbers = #tpu.dot_dimension_numbers<[1], [0], [0], [1], [0, 0, 1, 1], [], []>} : vector<16x128xbf16>, vector<128x384xbf16>, vector<16x384xf32> -> vector<16x384xf32>
    %c0_14 = arith.constant 0 : index
    %c0_15 = arith.constant 0 : index
    %c0_16 = arith.constant 0 : index
    %27 = vector.load %arg4[%c0_14, %c0_15, %c0_16] : memref<2x1x384xf32, #tpu.memory_space<vmem>>, vector<1x1x384xf32>
    %28 = vector.shape_cast %27 : vector<1x1x384xf32> to vector<1x384xf32>
    %29 = vector.broadcast %28 : vector<1x384xf32> to vector<16x384xf32>
    %30 = arith.addf %26, %29 : vector<16x384xf32>
    %31 = arith.truncf %22 : vector<16x128xf32> to vector<16x128xbf16>
    %c0_17 = arith.constant 0 : index
    %c0_18 = arith.constant 0 : index
    %c0_19 = arith.constant 0 : index
    %32 = vector.load %arg3[%c0_17, %c0_18, %c0_19] : memref<2x128x384xbf16, #tpu.memory_space<vmem>>, vector<1x128x384xbf16>
    %33 = vector.shape_cast %32 : vector<1x128x384xbf16> to vector<128x384xbf16>
    %cst_20 = arith.constant dense<0.000000e+00> : vector<16x384xf32>
    %34 = tpu.matmul %31, %33, %cst_20 {dimension_numbers = #tpu.dot_dimension_numbers<[1], [0], [0], [1], [0, 0, 1, 1], [], []>} : vector<16x128xbf16>, vector<128x384xbf16>, vector<16x384xf32> -> vector<16x384xf32>
    %c0_21 = arith.constant 0 : index
    %c0_22 = arith.constant 0 : index
    %c0_23 = arith.constant 0 : index
    %35 = vector.load %arg5[%c0_21, %c0_22, %c0_23] : memref<2x1x384xf32, #tpu.memory_space<vmem>>, vector<1x1x384xf32>
    %36 = vector.shape_cast %35 : vector<1x1x384xf32> to vector<1x384xf32>
    %37 = vector.broadcast %36 : vector<1x384xf32> to vector<16x384xf32>
    %38 = arith.addf %34, %37 : vector<16x384xf32>
    %39 = vector.extract_strided_slice %30 {offsets = [0, 0], sizes = [16, 128], strides = [1, 1]} : vector<16x384xf32> to vector<16x128xf32>
    %40 = vector.extract_strided_slice %38 {offsets = [0, 0], sizes = [16, 128], strides = [1, 1]} : vector<16x384xf32> to vector<16x128xf32>
    %41 = arith.addf %39, %40 : vector<16x128xf32>
    %42 = arith.negf %41 : vector<16x128xf32>
    %43 = math.exp %42 : vector<16x128xf32>
    %cst_24 = arith.constant 1.000000e+00 : f32
    %44 = vector.broadcast %cst_24 : f32 to vector<16x128xf32>
    %45 = arith.addf %44, %43 : vector<16x128xf32>
    %46 = arith.divf %44, %45 : vector<16x128xf32>
    %47 = vector.extract_strided_slice %30 {offsets = [0, 128], sizes = [16, 128], strides = [1, 1]} : vector<16x384xf32> to vector<16x128xf32>
    %48 = vector.extract_strided_slice %38 {offsets = [0, 128], sizes = [16, 128], strides = [1, 1]} : vector<16x384xf32> to vector<16x128xf32>
    %49 = arith.addf %47, %48 : vector<16x128xf32>
    %50 = arith.negf %49 : vector<16x128xf32>
    %51 = math.exp %50 : vector<16x128xf32>
    %cst_25 = arith.constant 1.000000e+00 : f32
    %52 = vector.broadcast %cst_25 : f32 to vector<16x128xf32>
    %53 = arith.addf %52, %51 : vector<16x128xf32>
    %54 = arith.divf %52, %53 : vector<16x128xf32>
    %55 = vector.extract_strided_slice %30 {offsets = [0, 256], sizes = [16, 128], strides = [1, 1]} : vector<16x384xf32> to vector<16x128xf32>
    %56 = vector.extract_strided_slice %38 {offsets = [0, 256], sizes = [16, 128], strides = [1, 1]} : vector<16x384xf32> to vector<16x128xf32>
    %57 = arith.mulf %46, %56 : vector<16x128xf32>
    %58 = arith.addf %55, %57 : vector<16x128xf32>
    %59 = math.tanh %58 : vector<16x128xf32>
    %cst_26 = arith.constant 1.000000e+00 : f32
    %60 = vector.broadcast %cst_26 : f32 to vector<16x128xf32>
    %61 = arith.subf %60, %54 : vector<16x128xf32>
    %62 = arith.mulf %61, %59 : vector<16x128xf32>
    %63 = arith.mulf %54, %22 : vector<16x128xf32>
    %64 = arith.addf %62, %63 : vector<16x128xf32>
    %c0_27 = arith.constant 0 : index
    %c0_28 = arith.constant 0 : index
    %c0_29 = arith.constant 0 : index
    %65 = vector.load %arg10[%c0_27, %c0_28, %c0_29] : memref<2x16x128xf32, #tpu.memory_space<vmem>>, vector<1x16x128xf32>
    %66 = vector.shape_cast %65 : vector<1x16x128xf32> to vector<16x128xf32>
    %67 = vector.shape_cast %64 : vector<16x128xf32> to vector<1x16x128xf32>
    tpu.vector_store %arg10[%c0_27, %c0_28, %c0_29], %67 {strides = array<i32>} : memref<2x16x128xf32, #tpu.memory_space<vmem>>, vector<1x16x128xf32>,
    %c1 = arith.constant 1 : index
    %c0_30 = arith.constant 0 : index
    %c0_31 = arith.constant 0 : index
    %68 = vector.load %arg10[%c1, %c0_30, %c0_31] : memref<2x16x128xf32, #tpu.memory_space<vmem>>, vector<1x16x128xf32>
    %69 = vector.shape_cast %68 : vector<1x16x128xf32> to vector<16x128xf32>
    %70 = arith.truncf %64 : vector<16x128xf32> to vector<16x128xbf16>
    %c1_32 = arith.constant 1 : index
    %c0_33 = arith.constant 0 : index
    %c0_34 = arith.constant 0 : index
    %71 = vector.load %arg2[%c1_32, %c0_33, %c0_34] : memref<2x128x384xbf16, #tpu.memory_space<vmem>>, vector<1x128x384xbf16>
    %72 = vector.shape_cast %71 : vector<1x128x384xbf16> to vector<128x384xbf16>
    %cst_35 = arith.constant dense<0.000000e+00> : vector<16x384xf32>
    %73 = tpu.matmul %70, %72, %cst_35 {dimension_numbers = #tpu.dot_dimension_numbers<[1], [0], [0], [1], [0, 0, 1, 1], [], []>} : vector<16x128xbf16>, vector<128x384xbf16>, vector<16x384xf32> -> vector<16x384xf32>
    %c1_36 = arith.constant 1 : index
    %c0_37 = arith.constant 0 : index
    %c0_38 = arith.constant 0 : index
    %74 = vector.load %arg4[%c1_36, %c0_37, %c0_38] : memref<2x1x384xf32, #tpu.memory_space<vmem>>, vector<1x1x384xf32>
    %75 = vector.shape_cast %74 : vector<1x1x384xf32> to vector<1x384xf32>
    %76 = vector.broadcast %75 : vector<1x384xf32> to vector<16x384xf32>
    %77 = arith.addf %73, %76 : vector<16x384xf32>
    %78 = arith.truncf %69 : vector<16x128xf32> to vector<16x128xbf16>
    %c1_39 = arith.constant 1 : index
    %c0_40 = arith.constant 0 : index
    %c0_41 = arith.constant 0 : index
    %79 = vector.load %arg3[%c1_39, %c0_40, %c0_41] : memref<2x128x384xbf16, #tpu.memory_space<vmem>>, vector<1x128x384xbf16>
    %80 = vector.shape_cast %79 : vector<1x128x384xbf16> to vector<128x384xbf16>
    %cst_42 = arith.constant dense<0.000000e+00> : vector<16x384xf32>
    %81 = tpu.matmul %78, %80, %cst_42 {dimension_numbers = #tpu.dot_dimension_numbers<[1], [0], [0], [1], [0, 0, 1, 1], [], []>} : vector<16x128xbf16>, vector<128x384xbf16>, vector<16x384xf32> -> vector<16x384xf32>
    %c1_43 = arith.constant 1 : index
    %c0_44 = arith.constant 0 : index
    %c0_45 = arith.constant 0 : index
    %82 = vector.load %arg5[%c1_43, %c0_44, %c0_45] : memref<2x1x384xf32, #tpu.memory_space<vmem>>, vector<1x1x384xf32>
    %83 = vector.shape_cast %82 : vector<1x1x384xf32> to vector<1x384xf32>
    %84 = vector.broadcast %83 : vector<1x384xf32> to vector<16x384xf32>
    %85 = arith.addf %81, %84 : vector<16x384xf32>
    %86 = vector.extract_strided_slice %77 {offsets = [0, 0], sizes = [16, 128], strides = [1, 1]} : vector<16x384xf32> to vector<16x128xf32>
    %87 = vector.extract_strided_slice %85 {offsets = [0, 0], sizes = [16, 128], strides = [1, 1]} : vector<16x384xf32> to vector<16x128xf32>
    %88 = arith.addf %86, %87 : vector<16x128xf32>
    %89 = arith.negf %88 : vector<16x128xf32>
    %90 = math.exp %89 : vector<16x128xf32>
    %cst_46 = arith.constant 1.000000e+00 : f32
    %91 = vector.broadcast %cst_46 : f32 to vector<16x128xf32>
    %92 = arith.addf %91, %90 : vector<16x128xf32>
    %93 = arith.divf %91, %92 : vector<16x128xf32>
    %94 = vector.extract_strided_slice %77 {offsets = [0, 128], sizes = [16, 128], strides = [1, 1]} : vector<16x384xf32> to vector<16x128xf32>
    %95 = vector.extract_strided_slice %85 {offsets = [0, 128], sizes = [16, 128], strides = [1, 1]} : vector<16x384xf32> to vector<16x128xf32>
    %96 = arith.addf %94, %95 : vector<16x128xf32>
    %97 = arith.negf %96 : vector<16x128xf32>
    %98 = math.exp %97 : vector<16x128xf32>
    %cst_47 = arith.constant 1.000000e+00 : f32
    %99 = vector.broadcast %cst_47 : f32 to vector<16x128xf32>
    %100 = arith.addf %99, %98 : vector<16x128xf32>
    %101 = arith.divf %99, %100 : vector<16x128xf32>
    %102 = vector.extract_strided_slice %77 {offsets = [0, 256], sizes = [16, 128], strides = [1, 1]} : vector<16x384xf32> to vector<16x128xf32>
    %103 = vector.extract_strided_slice %85 {offsets = [0, 256], sizes = [16, 128], strides = [1, 1]} : vector<16x384xf32> to vector<16x128xf32>
    %104 = arith.mulf %93, %103 : vector<16x128xf32>
    %105 = arith.addf %102, %104 : vector<16x128xf32>
    %106 = math.tanh %105 : vector<16x128xf32>
    %cst_48 = arith.constant 1.000000e+00 : f32
    %107 = vector.broadcast %cst_48 : f32 to vector<16x128xf32>
    %108 = arith.subf %107, %101 : vector<16x128xf32>
    %109 = arith.mulf %108, %106 : vector<16x128xf32>
    %110 = arith.mulf %101, %69 : vector<16x128xf32>
    %111 = arith.addf %109, %110 : vector<16x128xf32>
    %c1_49 = arith.constant 1 : index
    %c0_50 = arith.constant 0 : index
    %c0_51 = arith.constant 0 : index
    %112 = vector.load %arg10[%c1_49, %c0_50, %c0_51] : memref<2x16x128xf32, #tpu.memory_space<vmem>>, vector<1x16x128xf32>
    %113 = vector.shape_cast %112 : vector<1x16x128xf32> to vector<16x128xf32>
    %114 = vector.shape_cast %111 : vector<16x128xf32> to vector<1x16x128xf32>
    tpu.vector_store %arg10[%c1_49, %c0_50, %c0_51], %114 {strides = array<i32>} : memref<2x16x128xf32, #tpu.memory_space<vmem>>, vector<1x16x128xf32>,
    %115 = arith.truncf %111 : vector<16x128xf32> to vector<16x128xbf16>
    %c0_52 = arith.constant 0 : index
    %c0_53 = arith.constant 0 : index
    %116 = vector.load %arg6[%c0_52, %c0_53] : memref<128x128xbf16, #tpu.memory_space<vmem>>, vector<128x128xbf16>
    %cst_54 = arith.constant dense<0.000000e+00> : vector<16x128xf32>
    %117 = tpu.matmul %115, %116, %cst_54 {dimension_numbers = #tpu.dot_dimension_numbers<[1], [0], [0], [1], [0, 0, 1, 1], [], []>} : vector<16x128xbf16>, vector<128x128xbf16>, vector<16x128xf32> -> vector<16x128xf32>
    %c0_55 = arith.constant 0 : index
    %c0_56 = arith.constant 0 : index
    %118 = vector.load %arg7[%c0_55, %c0_56] : memref<1x128xf32, #tpu.memory_space<vmem>>, vector<1x128xf32>
    %119 = vector.broadcast %118 : vector<1x128xf32> to vector<16x128xf32>
    %120 = arith.addf %117, %119 : vector<16x128xf32>
    %cst_57 = arith.constant dense<0xFF800000> : vector<16xf32>
    %121 = vector.multi_reduction <maximumf>, %120, %cst_57 [1] : vector<16x128xf32> to vector<16xf32>
    %122 = vector.shape_cast %121 : vector<16xf32> to vector<16x1xf32>
    %123 = vector.broadcast %122 : vector<16x1xf32> to vector<16x128xf32>
    %124 = arith.subf %120, %123 : vector<16x128xf32>
    %125 = math.exp %124 : vector<16x128xf32>
    %cst_58 = arith.constant dense<0.000000e+00> : vector<16xf32>
    %126 = vector.multi_reduction <add>, %125, %cst_58 [1] : vector<16x128xf32> to vector<16xf32>
    %127 = vector.shape_cast %126 : vector<16xf32> to vector<16x1xf32>
    %128 = math.log %127 : vector<16x1xf32>
    %129 = vector.broadcast %128 : vector<16x1xf32> to vector<16x128xf32>
    %130 = arith.subf %124, %129 : vector<16x128xf32>
    %c0_59 = arith.constant 0 : index
    %c0_60 = arith.constant 0 : index
    %c0_61 = arith.constant 0 : index
    %131 = vector.load %arg9[%c0_59, %c0_60, %c0_61] : memref<1x16x128xf32, #tpu.memory_space<vmem>>, vector<1x16x128xf32>
    %132 = vector.shape_cast %131 : vector<1x16x128xf32> to vector<16x128xf32>
    %133 = vector.shape_cast %130 : vector<16x128xf32> to vector<1x16x128xf32>
    tpu.vector_store %arg9[%c0_59, %c0_60, %c0_61], %133 {strides = array<i32>} : memref<1x16x128xf32, #tpu.memory_space<vmem>>, vector<1x16x128xf32>,
    return
  }
  func.func @transform_0(%arg0: i32) -> (i32, i32, i32) {
    %c0_i32 = arith.constant 0 : i32
    %c0_i32_0 = arith.constant 0 : i32
    %c0_i32_1 = arith.constant 0 : i32
    return %arg0, %c0_i32, %c0_i32_0 : i32, i32, i32
  }
  func.func @transform_1(%arg0: i32) -> (i32, i32, i32) {
    %c0_i32 = arith.constant 0 : i32
    %c0_i32_0 = arith.constant 0 : i32
    %c0_i32_1 = arith.constant 0 : i32
    %c0_i32_2 = arith.constant 0 : i32
    return %c0_i32, %c0_i32_0, %c0_i32_1 : i32, i32, i32
  }
  func.func @transform_2(%arg0: i32) -> (i32, i32, i32) {
    %c0_i32 = arith.constant 0 : i32
    %c0_i32_0 = arith.constant 0 : i32
    %c0_i32_1 = arith.constant 0 : i32
    %c0_i32_2 = arith.constant 0 : i32
    return %c0_i32, %c0_i32_0, %c0_i32_1 : i32, i32, i32
  }
  func.func @transform_3(%arg0: i32) -> (i32, i32, i32) {
    %c0_i32 = arith.constant 0 : i32
    %c0_i32_0 = arith.constant 0 : i32
    %c0_i32_1 = arith.constant 0 : i32
    %c0_i32_2 = arith.constant 0 : i32
    return %c0_i32, %c0_i32_0, %c0_i32_1 : i32, i32, i32
  }
  func.func @transform_4(%arg0: i32) -> (i32, i32, i32) {
    %c0_i32 = arith.constant 0 : i32
    %c0_i32_0 = arith.constant 0 : i32
    %c0_i32_1 = arith.constant 0 : i32
    %c0_i32_2 = arith.constant 0 : i32
    return %c0_i32, %c0_i32_0, %c0_i32_1 : i32, i32, i32
  }
  func.func @transform_5(%arg0: i32) -> (i32, i32) {
    %c0_i32 = arith.constant 0 : i32
    %c0_i32_0 = arith.constant 0 : i32
    %c0_i32_1 = arith.constant 0 : i32
    return %c0_i32, %c0_i32_0 : i32, i32
  }
  func.func @transform_6(%arg0: i32) -> (i32, i32) {
    %c0_i32 = arith.constant 0 : i32
    %c0_i32_0 = arith.constant 0 : i32
    %c0_i32_1 = arith.constant 0 : i32
    return %c0_i32, %c0_i32_0 : i32, i32
  }
  func.func @transform_7(%arg0: i32) -> (i32, i32, i32) {
    %c0_i32 = arith.constant 0 : i32
    %c0_i32_0 = arith.constant 0 : i32
    %c0_i32_1 = arith.constant 0 : i32
    %c0_i32_2 = arith.constant 0 : i32
    return %c0_i32, %c0_i32_0, %c0_i32_1 : i32, i32, i32
  }
  func.func @transform_8(%arg0: i32) -> (i32, i32, i32) {
    %c0_i32 = arith.constant 0 : i32
    %c0_i32_0 = arith.constant 0 : i32
    %c0_i32_1 = arith.constant 0 : i32
    return %arg0, %c0_i32, %c0_i32_0 : i32, i32, i32
  }
  func.func @transform_9(%arg0: i32) -> (i32, i32, i32) {
    %c0_i32 = arith.constant 0 : i32
    %c0_i32_0 = arith.constant 0 : i32
    %c0_i32_1 = arith.constant 0 : i32
    %c0_i32_2 = arith.constant 0 : i32
    return %c0_i32, %c0_i32_0, %c0_i32_1 : i32, i32, i32
  }
}

</mosaic_0001>

<llo_original>
// kernel: rnn_de_forward.1
$region0: #{rnn_de_forward.1}
  #allocation0 [shape = 'u32[]', space=smem, size = 0x4, offset = 0x4, fixed_abs, tag = 'smem constant byte address 0x4 - core index']
  #allocation1 [shape = 'u32[144,128]{1,0:T(1,128)}', space=vmem, size = 0x12000, scoped, tag = 'internal scratch']
  %s0 = inlined_call_operand.vmem [shape: bf16[1,16,128], index: 0, kind: input, shape index: {}]
  %s1 = inlined_call_operand.hbm [shape: bf16[2,128,384], index: 1, kind: input, shape index: {}]
  %s2 = inlined_call_operand.hbm [shape: bf16[2,128,384], index: 2, kind: input, shape index: {}]
  %s3 = inlined_call_operand.vmem [shape: f32[2,1,384], index: 3, kind: input, shape index: {}]
  %s4 = inlined_call_operand.vmem [shape: f32[2,1,384], index: 4, kind: input, shape index: {}]
  %s5 = inlined_call_operand.vmem [shape: bf16[128,128], index: 5, kind: input, shape index: {}]
  %s6 = inlined_call_operand.vmem [shape: f32[1,128], index: 6, kind: input, shape index: {}]
  %s7 = inlined_call_operand.vmem [shape: f32[2,16,128], index: 7, kind: input, shape index: {}]
  %s8 = inlined_call_operand.vmem [shape: f32[1,16,128], index: 8, kind: output, shape index: {0}]
  %s9 = inlined_call_operand.vmem [shape: f32[2,16,128], index: 9, kind: output, shape index: {1}]
  %10 = xla_tuple %s8, %s9
  %s11 = sld [smem:[#allocation0]]
  $region62: #{rnn_de_forward.1} parent=0
    _
  %s13 = ssub.s32 1, %s11
  %s14 = scalar_select 0, %s13, %s11
  $region1: #{rnn_de_forward.1} parent=0
    #allocation2 [shape = 'u8[196608]{0}', space=vmem, size = 0x30000, scoped, tag = 'input window, operand 1, single buffered']
    #allocation3 [shape = 's32[1]{0}', space=sflag, size = 0x4, scoped, tag = 'scoped memory for rnn_de_forward.1']
    #allocation4 [shape = 'u8[196608]{0}', space=vmem, size = 0x30000, scoped, tag = 'input window, operand 2, single buffered']
    #allocation5 [shape = 's32[1]{0}', space=sflag, size = 0x4, scoped, tag = 'scoped memory for rnn_de_forward.1']
    %15 = vsyncpa [#allocation3], 0
    %16 = vsyncpa [#allocation5], 0
    // Predicated region
    $region2: #{rnn_de_forward.1} parent=1 // pred_check
      _
    $region3: #{rnn_de_forward.1} parent=1 // pred_check_branch
      %18 = sbr.rel (0) target = $region5
    $region4: #{rnn_de_forward.1} parent=1 // pred_region
      _
    $region5: #{rnn_de_forward.1} parent=1 // pred_fallthru
      _
    // Predicated region
    $region6: #{rnn_de_forward.1} parent=1 // pred_check
      _
    $region7: #{rnn_de_forward.1} parent=1 // pred_check_branch
      %20 = sbr.rel (0) target = $region9
    $region8: #{rnn_de_forward.1} parent=1 // pred_region
      %s22 = ssub.s32 6144, 6144
      %23 = vsyncadd [#allocation3], %s22
      %s24 = sshll.u32 [#allocation2], 4
      %s25 = int_to_ptr.vmem [resolvable:$true] %s24
      %30 = dma.hbm_to_vmem [thread:$0]  %s1, 6144, %s25, [#allocation3], 192, 192, 12
    $region9: #{rnn_de_forward.1} parent=1 // pred_fallthru
      _
    // Predicated region
    $region10: #{rnn_de_forward.1} parent=1 // pred_check
      _
    $region11: #{rnn_de_forward.1} parent=1 // pred_check_branch
      %32 = sbr.rel (0) target = $region13
    $region12: #{rnn_de_forward.1} parent=1 // pred_region
      %s34 = ssub.s32 6144, 6144
      %35 = vsyncadd [#allocation5], %s34
      %s36 = sshll.u32 [#allocation4], 4
      %s37 = int_to_ptr.vmem [resolvable:$true] %s36
      %42 = dma.hbm_to_vmem [thread:$0]  %s2, 6144, %s37, [#allocation5], 192, 192, 12
    $region13: #{rnn_de_forward.1} parent=1 // pred_fallthru
      _
    // Predicated region
    $region14: #{rnn_de_forward.1} parent=1 // pred_check
      _
    $region15: #{rnn_de_forward.1} parent=1 // pred_check_branch
      %44 = sbr.rel (0) target = $region17
    $region16: #{rnn_de_forward.1} parent=1 // pred_region
      _
    $region17: #{rnn_de_forward.1} parent=1 // pred_fallthru
      _
    // Predicated region
    $region18: #{rnn_de_forward.1} parent=1 // pred_check
      _
    $region19: #{rnn_de_forward.1} parent=1 // pred_check_branch
      %46 = sbr.rel (0) target = $region21
    $region20: #{rnn_de_forward.1} parent=1 // pred_region
      _
    $region21: #{rnn_de_forward.1} parent=1 // pred_fallthru
      _
    // Predicated region
    $region22: #{rnn_de_forward.1} parent=1 // pred_check
      _
    $region23: #{rnn_de_forward.1} parent=1 // pred_check_branch
      %48 = sbr.rel (0) target = $region25
    $region24: #{rnn_de_forward.1} parent=1 // pred_region
      _
    $region25: #{rnn_de_forward.1} parent=1 // pred_fallthru
      _
    // Predicated region
    $region26: #{rnn_de_forward.1} parent=1 // pred_check
      _
    $region27: #{rnn_de_forward.1} parent=1 // pred_check_branch
      %50 = sbr.rel (0) target = $region29
    $region28: #{rnn_de_forward.1} parent=1 // pred_region
      _
    $region29: #{rnn_de_forward.1} parent=1 // pred_fallthru
      _
    // Predicated region
    $region30: #{rnn_de_forward.1} parent=1 // pred_check
      _
    $region31: #{rnn_de_forward.1} parent=1 // pred_check_branch
      %52 = sbr.rel (0) target = $region33
    $region32: #{rnn_de_forward.1} parent=1 // pred_region
      _
    $region33: #{rnn_de_forward.1} parent=1 // pred_fallthru
      _
    // Predicated region
    $region34: #{rnn_de_forward.1} parent=1 // pred_check
      _
    $region35: #{rnn_de_forward.1} parent=1 // pred_check_branch
      %54 = sbr.rel (0) target = $region37
    $region36: #{rnn_de_forward.1} parent=1 // pred_region
      %55 = dma.done [#allocation3], 6144
    $region37: #{rnn_de_forward.1} parent=1 // pred_fallthru
      _
    // Predicated region
    $region38: #{rnn_de_forward.1} parent=1 // pred_check
      _
    $region39: #{rnn_de_forward.1} parent=1 // pred_check_branch
      %57 = sbr.rel (0) target = $region41
    $region40: #{rnn_de_forward.1} parent=1 // pred_region
      %58 = dma.done [#allocation5], 6144
    $region41: #{rnn_de_forward.1} parent=1 // pred_fallthru
      _
    %p60 = scmp.eq.s32.totalorder 0, 0
    // Predicated region
    $region42: #{rnn_de_forward.1} parent=1 // pred_check
      %p61 = pneg %p60
    $region43: #{rnn_de_forward.1} parent=1 // pred_check_branch
      %63 = sbr.rel (%p61) target = $region45
    $region44: #{rnn_de_forward.1} parent=1 // pred_region
      %v64 = vld [vmem:[%s7] sm:$0xff]
      %v65 = vld [vmem:[%s7 + $0x8] sm:$0xff]
      %v66 = vld [vmem:[%s7 + $0x10] sm:$0xff]
      %v67 = vld [vmem:[%s7 + $0x18] sm:$0xff]
      %68 = vst [vmem:[%s9] sm:$0xff] %v64
      %69 = vst [vmem:[%s9 + $0x8] sm:$0xff] %v65
      %70 = vst [vmem:[%s9 + $0x10] sm:$0xff] %v66
      %71 = vst [vmem:[%s9 + $0x18] sm:$0xff] %v67
    $region45: #{rnn_de_forward.1} parent=1 // pred_fallthru
      _
    %v72 = vld [vmem:[%s0] sm:$0xf]
    %v73 = vld [vmem:[%s0 + $0x4] sm:$0xf]
    %v74 = vunpack.c.l.bf16 %v72
    %v75 = vunpack.c.l.bf16 %v73
    %v76 = vmul.f32 %v74, %v74
    %v77 = vmul.f32 %v75, %v75
    %78 = vadd.xlane.f32.xlu0 %v76
    %v79 = vpop.xlane.xlu0 %78
    %80 = vadd.xlane.f32.xlu0 %v77
    %v81 = vpop.xlane.xlu0 %80
    %v82 = vrsqrt.pop %v79
    %v83 = vmul.f32 %v79, %v82
    %vm84 = vcmp.eq.f32.partialorder %v79, inf
    %v85 = vsel %vm84, %v79, %v83
    %vm86 = vcmp.eq.f32.partialorder %v79, 0.0
    %v87 = vand.u32 %v79, 2147483648
    %v88 = vsel %vm86, %v87, %v85
    %v89 = vrsqrt.pop %v81
    %v90 = vmul.f32 %v81, %v89
    %vm91 = vcmp.eq.f32.partialorder %v81, inf
    %v92 = vsel %vm91, %v81, %v90
    %vm93 = vcmp.eq.f32.partialorder %v81, 0.0
    %v94 = vand.u32 %v81, 2147483648
    %v95 = vsel %vm93, %v94, %v92
    %v96 = vadd.f32 %v88, 1e-07
    %v97 = vadd.f32 %v95, 1e-07
    %v98 = vrcp.pop %v96
    %v99 = vrcp.pop %v97
    %vm100 = vcmp.gt.f32.partialorder %v88, 1.0
    %vm101 = vcmp.gt.f32.partialorder %v95, 1.0
    %v102 = vsel %vm100, %v98, 1.0
    %v103 = vsel %vm101, %v99, 1.0
    %v104 = vmul.f32 %v74, %v102
    %v105 = vmul.f32 %v75, %v103
    %v106 = vmax.f32 %v104, 0.0
    %v107 = vmax.f32 %v105, 0.0
    %v108 = vld [vmem:[%s9] sm:$0xff]
    %v109 = vld [vmem:[%s9 + $0x8] sm:$0xff]
    %v110 = vpack.c.bf16 %v107, %v106
    %v111 = vld [vmem:[#allocation2] sm:$0xff]
    %v112 = vld [vmem:[#allocation2 + $0x8] sm:$0xf]
    %v113 = vld [vmem:[#allocation2 + $0xc] sm:$0xff]
    %v114 = vld [vmem:[#allocation2 + $0x14] sm:$0xf]
    %v115 = vld [vmem:[#allocation2 + $0x18] sm:$0xff]
    %v116 = vld [vmem:[#allocation2 + $0x20] sm:$0xf]
    %v117 = vld [vmem:[#allocation2 + $0x24] sm:$0xff]
    %v118 = vld [vmem:[#allocation2 + $0x2c] sm:$0xf]
    %v119 = vld [vmem:[#allocation2 + $0x30] sm:$0xff]
    %v120 = vld [vmem:[#allocation2 + $0x38] sm:$0xf]
    %v121 = vld [vmem:[#allocation2 + $0x3c] sm:$0xff]
    %v122 = vld [vmem:[#allocation2 + $0x44] sm:$0xf]
    %v123 = vld [vmem:[#allocation2 + $0x48] sm:$0xff]
    %v124 = vld [vmem:[#allocation2 + $0x50] sm:$0xf]
    %v125 = vld [vmem:[#allocation2 + $0x54] sm:$0xff]
    %v126 = vld [vmem:[#allocation2 + $0x5c] sm:$0xf]
    %v127 = vld [vmem:[#allocation2 + $0x60] sm:$0xff]
    %v128 = vld [vmem:[#allocation2 + $0x68] sm:$0xf]
    %v129 = vld [vmem:[#allocation2 + $0x6c] sm:$0xff]
    %v130 = vld [vmem:[#allocation2 + $0x74] sm:$0xf]
    %v131 = vld [vmem:[#allocation2 + $0x78] sm:$0xff]
    %v132 = vld [vmem:[#allocation2 + $0x80] sm:$0xf]
    %v133 = vld [vmem:[#allocation2 + $0x84] sm:$0xff]
    %v134 = vld [vmem:[#allocation2 + $0x8c] sm:$0xf]
    %v135 = vld [vmem:[#allocation2 + $0x90] sm:$0xff]
    %v136 = vld [vmem:[#allocation2 + $0x98] sm:$0xf]
    %v137 = vld [vmem:[#allocation2 + $0x9c] sm:$0xff]
    %v138 = vld [vmem:[#allocation2 + $0xa4] sm:$0xf]
    %v139 = vld [vmem:[#allocation2 + $0xa8] sm:$0xff]
    %v140 = vld [vmem:[#allocation2 + $0xb0] sm:$0xf]
    %v141 = vld [vmem:[#allocation2 + $0xb4] sm:$0xff]
    %v142 = vld [vmem:[#allocation2 + $0xbc] sm:$0xf]
    %v143 = vld [vmem:[%s3] sm:$0x7]
    %v145 = vlaneseq
    %v146 = vshrl.u32 %v145, 7
    %v147 = vsub.s32 0, %v146
    %v148 = vrot.slane %v143, %v147
    %v149 = vlaneseq
    %v150 = vshrl.u32 %v149, 7
    %v151 = vsub.s32 1, %v150
    %v152 = vrot.slane %v143, %v151
    %v153 = vlaneseq
    %v154 = vshrl.u32 %v153, 7
    %v155 = vsub.s32 2, %v154
    %v156 = vrot.slane %v143, %v155
    %v192 = vunpack.c.l.b16 %v111
    %v193 = vunpack.c.h.b16 %v111
    %v194 = vunpack.c.l.b16 %v112
    %v195 = vunpack.c.l.b16 %v113
    %v196 = vunpack.c.h.b16 %v113
    %v197 = vunpack.c.l.b16 %v114
    %v198 = vunpack.c.l.b16 %v115
    %v199 = vunpack.c.h.b16 %v115
    %v200 = vunpack.c.l.b16 %v116
    %v201 = vunpack.c.l.b16 %v117
    %v202 = vunpack.c.h.b16 %v117
    %v203 = vunpack.c.l.b16 %v118
    %v204 = vunpack.c.l.b16 %v119
    %v205 = vunpack.c.h.b16 %v119
    %v206 = vunpack.c.l.b16 %v120
    %v207 = vunpack.c.l.b16 %v121
    %v208 = vunpack.c.h.b16 %v121
    %v209 = vunpack.c.l.b16 %v122
    %v210 = vunpack.c.l.b16 %v123
    %v211 = vunpack.c.h.b16 %v123
    %v212 = vunpack.c.l.b16 %v124
    %v213 = vunpack.c.l.b16 %v125
    %v214 = vunpack.c.h.b16 %v125
    %v215 = vunpack.c.l.b16 %v126
    %v216 = vunpack.c.l.b16 %v127
    %v217 = vunpack.c.h.b16 %v127
    %v218 = vunpack.c.l.b16 %v128
    %v219 = vunpack.c.l.b16 %v129
    %v220 = vunpack.c.h.b16 %v129
    %v221 = vunpack.c.l.b16 %v130
    %v222 = vunpack.c.l.b16 %v131
    %v223 = vunpack.c.h.b16 %v131
    %v224 = vunpack.c.l.b16 %v132
    %v225 = vunpack.c.l.b16 %v133
    %v226 = vunpack.c.h.b16 %v133
    %v227 = vunpack.c.l.b16 %v134
    %v228 = vunpack.c.l.b16 %v135
    %v229 = vunpack.c.h.b16 %v135
    %v230 = vunpack.c.l.b16 %v136
    %v231 = vunpack.c.l.b16 %v137
    %v232 = vunpack.c.h.b16 %v137
    %v233 = vunpack.c.l.b16 %v138
    %v234 = vunpack.c.l.b16 %v139
    %v235 = vunpack.c.h.b16 %v139
    %v236 = vunpack.c.l.b16 %v140
    %v237 = vunpack.c.l.b16 %v141
    %v238 = vunpack.c.h.b16 %v141
    %v239 = vunpack.c.l.b16 %v142
    %v240 = vpack.c.b16 %v195, %v192
    %v241 = vpack.c.b16 %v196, %v193
    %v242 = vpack.c.b16 %v197, %v194
    %v243 = vpack.c.b16 %v201, %v198
    %v244 = vpack.c.b16 %v202, %v199
    %v245 = vpack.c.b16 %v203, %v200
    %v246 = vpack.c.b16 %v207, %v204
    %v247 = vpack.c.b16 %v208, %v205
    %v248 = vpack.c.b16 %v209, %v206
    %v249 = vpack.c.b16 %v213, %v210
    %v250 = vpack.c.b16 %v214, %v211
    %v251 = vpack.c.b16 %v215, %v212
    %v252 = vpack.c.b16 %v219, %v216
    %v253 = vpack.c.b16 %v220, %v217
    %v254 = vpack.c.b16 %v221, %v218
    %v255 = vpack.c.b16 %v225, %v222
    %v256 = vpack.c.b16 %v226, %v223
    %v257 = vpack.c.b16 %v227, %v224
    %v258 = vpack.c.b16 %v231, %v228
    %v259 = vpack.c.b16 %v232, %v229
    %v260 = vpack.c.b16 %v233, %v230
    %v261 = vpack.c.b16 %v237, %v234
    %v262 = vpack.c.b16 %v238, %v235
    %v263 = vpack.c.b16 %v239, %v236
    %288 = vmatprep.subr.bf16.mxu0 %v262
    %289 = vmatpush1.bf16.msra.mxu0 %v261
    %290 = vmatprep.subr.bf16.mxu0 %v259
    %291 = vmatpush1.bf16.msra.mxu0 %v258
    %292 = vmatprep.subr.bf16.mxu0 %v256
    %293 = vmatpush1.bf16.msra.mxu0 %v255
    %294 = vmatprep.subr.bf16.mxu0 %v253
    %295 = vmatpush1.bf16.msra.mxu0 %v252
    %296 = vmatprep.subr.bf16.mxu0 %v250
    %297 = vmatpush1.bf16.msra.mxu0 %v249
    %298 = vmatprep.subr.bf16.mxu0 %v247
    %299 = vmatpush1.bf16.msra.mxu0 %v246
    %300 = vmatprep.subr.bf16.mxu0 %v244
    %301 = vmatpush1.bf16.msra.mxu0 %v243
    %302 = vmatprep.subr.bf16.mxu0 %v241
    %303 = vmatpush1.bf16.msra.mxu0 %v240
    %304 = vmatprep.subr.bf16.mxu0 0
    %305 = vmatpush2.bf16.msra.mxu0 0
    %306 = vmatprep.subr.bf16.mxu0 0
    %307 = vmatpush2.bf16.msra.mxu0 0
    %308 = vmatprep.subr.bf16.mxu0 0
    %309 = vmatpush2.bf16.msra.mxu0 0
    %310 = vmatprep.subr.bf16.mxu0 0
    %311 = vmatpush2.bf16.msra.mxu0 0
    %312 = vmatprep.subr.bf16.mxu0 0
    %313 = vmatpush2.bf16.msra.mxu0 0
    %314 = vmatprep.subr.bf16.mxu0 0
    %315 = vmatpush2.bf16.msra.mxu0 0
    %316 = vmatprep.subr.bf16.mxu0 0
    %317 = vmatpush2.bf16.msra.mxu0 0
    %318 = vmatprep.subr.bf16.mxu0 0
    %319 = vmatpush2.bf16.msra.mxu0 0
    %320 = vmatprep.mubr.bf16.mxu0 0
    %321 = vmatmul.mubr.bf16.gmra.mxu0 %v110
    %v322 = vpop.f32.mrf.mxu0
    %v323 = vadd.f32 %v148, %v322
    %v324 = vpop.f32.mrf.mxu0
    %v325 = vadd.f32 %v152, %v324
    %v326 = vpop.f32.mrf.mxu0
    %v327 = vadd.f32 %v148, %v326
    %v328 = vpop.f32.mrf.mxu0
    %v329 = vadd.f32 %v152, %v328
    %330 = vdwg.mxu0
    %331 = vmatprep.subr.bf16.mxu0 0
    %332 = vmatpush1.bf16.msra.mxu0 %v263
    %333 = vmatprep.subr.bf16.mxu0 0
    %334 = vmatpush1.bf16.msra.mxu0 %v260
    %335 = vmatprep.subr.bf16.mxu0 0
    %336 = vmatpush1.bf16.msra.mxu0 %v257
    %337 = vmatprep.subr.bf16.mxu0 0
    %338 = vmatpush1.bf16.msra.mxu0 %v254
    %339 = vmatprep.subr.bf16.mxu0 0
    %340 = vmatpush1.bf16.msra.mxu0 %v251
    %341 = vmatprep.subr.bf16.mxu0 0
    %342 = vmatpush1.bf16.msra.mxu0 %v248
    %343 = vmatprep.subr.bf16.mxu0 0
    %344 = vmatpush1.bf16.msra.mxu0 %v245
    %345 = vmatprep.subr.bf16.mxu0 0
    %346 = vmatpush1.bf16.msra.mxu0 %v242
    %347 = vmatprep.subr.bf16.mxu0 0
    %348 = vmatpush2.bf16.msra.mxu0 0
    %349 = vmatprep.subr.bf16.mxu0 0
    %350 = vmatpush2.bf16.msra.mxu0 0
    %351 = vmatprep.subr.bf16.mxu0 0
    %352 = vmatpush2.bf16.msra.mxu0 0
    %353 = vmatprep.subr.bf16.mxu0 0
    %354 = vmatpush2.bf16.msra.mxu0 0
    %355 = vmatprep.subr.bf16.mxu0 0
    %356 = vmatpush2.bf16.msra.mxu0 0
    %357 = vmatprep.subr.bf16.mxu0 0
    %358 = vmatpush2.bf16.msra.mxu0 0
    %359 = vmatprep.subr.bf16.mxu0 0
    %360 = vmatpush2.bf16.msra.mxu0 0
    %361 = vmatprep.subr.bf16.mxu0 0
    %362 = vmatpush2.bf16.msra.mxu0 0
    %363 = vmatprep.mubr.bf16.mxu0 0
    %364 = vmatmul.mubr.bf16.gmra.mxu0 %v110
    %v365 = vpop.f32.mrf.mxu0
    %v366 = vadd.f32 %v156, %v365
    %v367 = vpop.f32.mrf.mxu0
    %v368 = vpop.f32.mrf.mxu0
    %v369 = vadd.f32 %v156, %v368
    %v370 = vpop.f32.mrf.mxu0
    %371 = vdwg.mxu0
    %v372 = vpack.c.bf16 %v109, %v108
    %v373 = vld [vmem:[#allocation4] sm:$0xff]
    %v374 = vld [vmem:[#allocation4 + $0x8] sm:$0xf]
    %v375 = vld [vmem:[#allocation4 + $0xc] sm:$0xff]
    %v376 = vld [vmem:[#allocation4 + $0x14] sm:$0xf]
    %v377 = vld [vmem:[#allocation4 + $0x18] sm:$0xff]
    %v378 = vld [vmem:[#allocation4 + $0x20] sm:$0xf]
    %v379 = vld [vmem:[#allocation4 + $0x24] sm:$0xff]
    %v380 = vld [vmem:[#allocation4 + $0x2c] sm:$0xf]
    %v381 = vld [vmem:[#allocation4 + $0x30] sm:$0xff]
    %v382 = vld [vmem:[#allocation4 + $0x38] sm:$0xf]
    %v383 = vld [vmem:[#allocation4 + $0x3c] sm:$0xff]
    %v384 = vld [vmem:[#allocation4 + $0x44] sm:$0xf]
    %v385 = vld [vmem:[#allocation4 + $0x48] sm:$0xff]
    %v386 = vld [vmem:[#allocation4 + $0x50] sm:$0xf]
    %v387 = vld [vmem:[#allocation4 + $0x54] sm:$0xff]
    %v388 = vld [vmem:[#allocation4 + $0x5c] sm:$0xf]
    %v389 = vld [vmem:[#allocation4 + $0x60] sm:$0xff]
    %v390 = vld [vmem:[#allocation4 + $0x68] sm:$0xf]
    %v391 = vld [vmem:[#allocation4 + $0x6c] sm:$0xff]
    %v392 = vld [vmem:[#allocation4 + $0x74] sm:$0xf]
    %v393 = vld [vmem:[#allocation4 + $0x78] sm:$0xff]
    %v394 = vld [vmem:[#allocation4 + $0x80] sm:$0xf]
    %v395 = vld [vmem:[#allocation4 + $0x84] sm:$0xff]
    %v396 = vld [vmem:[#allocation4 + $0x8c] sm:$0xf]
    %v397 = vld [vmem:[#allocation4 + $0x90] sm:$0xff]
    %v398 = vld [vmem:[#allocation4 + $0x98] sm:$0xf]
    %v399 = vld [vmem:[#allocation4 + $0x9c] sm:$0xff]
    %v400 = vld [vmem:[#allocation4 + $0xa4] sm:$0xf]
    %v401 = vld [vmem:[#allocation4 + $0xa8] sm:$0xff]
    %v402 = vld [vmem:[#allocation4 + $0xb0] sm:$0xf]
    %v403 = vld [vmem:[#allocation4 + $0xb4] sm:$0xff]
    %v404 = vld [vmem:[#allocation4 + $0xbc] sm:$0xf]
    %v405 = vld [vmem:[%s4] sm:$0x7]
    %v407 = vlaneseq
    %v408 = vshrl.u32 %v407, 7
    %v409 = vsub.s32 0, %v408
    %v410 = vrot.slane %v405, %v409
    %v411 = vlaneseq
    %v412 = vshrl.u32 %v411, 7
    %v413 = vsub.s32 1, %v412
    %v414 = vrot.slane %v405, %v413
    %v415 = vlaneseq
    %v416 = vshrl.u32 %v415, 7
    %v417 = vsub.s32 2, %v416
    %v418 = vrot.slane %v405, %v417
    %v454 = vunpack.c.l.b16 %v373
    %v455 = vunpack.c.h.b16 %v373
    %v456 = vunpack.c.l.b16 %v374
    %v457 = vunpack.c.l.b16 %v375
    %v458 = vunpack.c.h.b16 %v375
    %v459 = vunpack.c.l.b16 %v376
    %v460 = vunpack.c.l.b16 %v377
    %v461 = vunpack.c.h.b16 %v377
    %v462 = vunpack.c.l.b16 %v378
    %v463 = vunpack.c.l.b16 %v379
    %v464 = vunpack.c.h.b16 %v379
    %v465 = vunpack.c.l.b16 %v380
    %v466 = vunpack.c.l.b16 %v381
    %v467 = vunpack.c.h.b16 %v381
    %v468 = vunpack.c.l.b16 %v382
    %v469 = vunpack.c.l.b16 %v383
    %v470 = vunpack.c.h.b16 %v383
    %v471 = vunpack.c.l.b16 %v384
    %v472 = vunpack.c.l.b16 %v385
    %v473 = vunpack.c.h.b16 %v385
    %v474 = vunpack.c.l.b16 %v386
    %v475 = vunpack.c.l.b16 %v387
    %v476 = vunpack.c.h.b16 %v387
    %v477 = vunpack.c.l.b16 %v388
    %v478 = vunpack.c.l.b16 %v389
    %v479 = vunpack.c.h.b16 %v389
    %v480 = vunpack.c.l.b16 %v390
    %v481 = vunpack.c.l.b16 %v391
    %v482 = vunpack.c.h.b16 %v391
    %v483 = vunpack.c.l.b16 %v392
    %v484 = vunpack.c.l.b16 %v393
    %v485 = vunpack.c.h.b16 %v393
    %v486 = vunpack.c.l.b16 %v394
    %v487 = vunpack.c.l.b16 %v395
    %v488 = vunpack.c.h.b16 %v395
    %v489 = vunpack.c.l.b16 %v396
    %v490 = vunpack.c.l.b16 %v397
    %v491 = vunpack.c.h.b16 %v397
    %v492 = vunpack.c.l.b16 %v398
    %v493 = vunpack.c.l.b16 %v399
    %v494 = vunpack.c.h.b16 %v399
    %v495 = vunpack.c.l.b16 %v400
    %v496 = vunpack.c.l.b16 %v401
    %v497 = vunpack.c.h.b16 %v401
    %v498 = vunpack.c.l.b16 %v402
    %v499 = vunpack.c.l.b16 %v403
    %v500 = vunpack.c.h.b16 %v403
    %v501 = vunpack.c.l.b16 %v404
    %v502 = vpack.c.b16 %v457, %v454
    %v503 = vpack.c.b16 %v458, %v455
    %v504 = vpack.c.b16 %v459, %v456
    %v505 = vpack.c.b16 %v463, %v460
    %v506 = vpack.c.b16 %v464, %v461
    %v507 = vpack.c.b16 %v465, %v462
    %v508 = vpack.c.b16 %v469, %v466
    %v509 = vpack.c.b16 %v470, %v467
    %v510 = vpack.c.b16 %v471, %v468
    %v511 = vpack.c.b16 %v475, %v472
    %v512 = vpack.c.b16 %v476, %v473
    %v513 = vpack.c.b16 %v477, %v474
    %v514 = vpack.c.b16 %v481, %v478
    %v515 = vpack.c.b16 %v482, %v479
    %v516 = vpack.c.b16 %v483, %v480
    %v517 = vpack.c.b16 %v487, %v484
    %v518 = vpack.c.b16 %v488, %v485
    %v519 = vpack.c.b16 %v489, %v486
    %v520 = vpack.c.b16 %v493, %v490
    %v521 = vpack.c.b16 %v494, %v491
    %v522 = vpack.c.b16 %v495, %v492
    %v523 = vpack.c.b16 %v499, %v496
    %v524 = vpack.c.b16 %v500, %v497
    %v525 = vpack.c.b16 %v501, %v498
    %550 = vmatprep.subr.bf16.mxu0 %v524
    %551 = vmatpush1.bf16.msra.mxu0 %v523
    %552 = vmatprep.subr.bf16.mxu0 %v521
    %553 = vmatpush1.bf16.msra.mxu0 %v520
    %554 = vmatprep.subr.bf16.mxu0 %v518
    %555 = vmatpush1.bf16.msra.mxu0 %v517
    %556 = vmatprep.subr.bf16.mxu0 %v515
    %557 = vmatpush1.bf16.msra.mxu0 %v514
    %558 = vmatprep.subr.bf16.mxu0 %v512
    %559 = vmatpush1.bf16.msra.mxu0 %v511
    %560 = vmatprep.subr.bf16.mxu0 %v509
    %561 = vmatpush1.bf16.msra.mxu0 %v508
    %562 = vmatprep.subr.bf16.mxu0 %v506
    %563 = vmatpush1.bf16.msra.mxu0 %v505
    %564 = vmatprep.subr.bf16.mxu0 %v503
    %565 = vmatpush1.bf16.msra.mxu0 %v502
    %566 = vmatprep.subr.bf16.mxu0 0
    %567 = vmatpush2.bf16.msra.mxu0 0
    %568 = vmatprep.subr.bf16.mxu0 0
    %569 = vmatpush2.bf16.msra.mxu0 0
    %570 = vmatprep.subr.bf16.mxu0 0
    %571 = vmatpush2.bf16.msra.mxu0 0
    %572 = vmatprep.subr.bf16.mxu0 0
    %573 = vmatpush2.bf16.msra.mxu0 0
    %574 = vmatprep.subr.bf16.mxu0 0
    %575 = vmatpush2.bf16.msra.mxu0 0
    %576 = vmatprep.subr.bf16.mxu0 0
    %577 = vmatpush2.bf16.msra.mxu0 0
    %578 = vmatprep.subr.bf16.mxu0 0
    %579 = vmatpush2.bf16.msra.mxu0 0
    %580 = vmatprep.subr.bf16.mxu0 0
    %581 = vmatpush2.bf16.msra.mxu0 0
    %582 = vmatprep.mubr.bf16.mxu0 0
    %583 = vmatmul.mubr.bf16.gmra.mxu0 %v372
    %v584 = vpop.f32.mrf.mxu0
    %v585 = vadd.f32 %v410, %v584
    %v586 = vpop.f32.mrf.mxu0
    %v587 = vadd.f32 %v414, %v586
    %v588 = vpop.f32.mrf.mxu0
    %v589 = vadd.f32 %v410, %v588
    %v590 = vpop.f32.mrf.mxu0
    %v591 = vadd.f32 %v414, %v590
    %592 = vdwg.mxu0
    %593 = vmatprep.subr.bf16.mxu0 0
    %594 = vmatpush1.bf16.msra.mxu0 %v525
    %595 = vmatprep.subr.bf16.mxu0 0
    %596 = vmatpush1.bf16.msra.mxu0 %v522
    %597 = vmatprep.subr.bf16.mxu0 0
    %598 = vmatpush1.bf16.msra.mxu0 %v519
    %599 = vmatprep.subr.bf16.mxu0 0
    %600 = vmatpush1.bf16.msra.mxu0 %v516
    %601 = vmatprep.subr.bf16.mxu0 0
    %602 = vmatpush1.bf16.msra.mxu0 %v513
    %603 = vmatprep.subr.bf16.mxu0 0
    %604 = vmatpush1.bf16.msra.mxu0 %v510
    %605 = vmatprep.subr.bf16.mxu0 0
    %606 = vmatpush1.bf16.msra.mxu0 %v507
    %607 = vmatprep.subr.bf16.mxu0 0
    %608 = vmatpush1.bf16.msra.mxu0 %v504
    %609 = vmatprep.subr.bf16.mxu0 0
    %610 = vmatpush2.bf16.msra.mxu0 0
    %611 = vmatprep.subr.bf16.mxu0 0
    %612 = vmatpush2.bf16.msra.mxu0 0
    %613 = vmatprep.subr.bf16.mxu0 0
    %614 = vmatpush2.bf16.msra.mxu0 0
    %615 = vmatprep.subr.bf16.mxu0 0
    %616 = vmatpush2.bf16.msra.mxu0 0
    %617 = vmatprep.subr.bf16.mxu0 0
    %618 = vmatpush2.bf16.msra.mxu0 0
    %619 = vmatprep.subr.bf16.mxu0 0
    %620 = vmatpush2.bf16.msra.mxu0 0
    %621 = vmatprep.subr.bf16.mxu0 0
    %622 = vmatpush2.bf16.msra.mxu0 0
    %623 = vmatprep.subr.bf16.mxu0 0
    %624 = vmatpush2.bf16.msra.mxu0 0
    %625 = vmatprep.mubr.bf16.mxu0 0
    %626 = vmatmul.mubr.bf16.gmra.mxu0 %v372
    %v627 = vpop.f32.mrf.mxu0
    %v628 = vadd.f32 %v418, %v627
    %v629 = vpop.f32.mrf.mxu0
    %v630 = vpop.f32.mrf.mxu0
    %v631 = vadd.f32 %v418, %v630
    %v632 = vpop.f32.mrf.mxu0
    %633 = vdwg.mxu0
    %v634 = vadd.f32 %v323, %v585
    %v635 = vadd.f32 %v327, %v589
    %v636 = vxor.u32 %v634, 2147483648
    %v637 = vxor.u32 %v635, 2147483648
    %v638 = vmul.f32 %v636, 1.442695
    %v639 = vpow.pop %v638
    %v640 = vmul.f32 %v637, 1.442695
    %v641 = vpow.pop %v640
    %v642 = vadd.f32 %v639, 1.0
    %v643 = vadd.f32 %v641, 1.0
    %v644 = vrcp.pop %v642
    %v645 = vmul.f32 1.0, %v644
    %v646 = vrcp.pop %v643
    %v647 = vmul.f32 1.0, %v646
    %v648 = vadd.f32 %v325, %v587
    %v649 = vadd.f32 %v329, %v591
    %v650 = vxor.u32 %v648, 2147483648
    %v651 = vxor.u32 %v649, 2147483648
    %v652 = vmul.f32 %v650, 1.442695
    %v653 = vpow.pop %v652
    %v654 = vmul.f32 %v651, 1.442695
    %v655 = vpow.pop %v654
    %v656 = vadd.f32 %v653, 1.0
    %v657 = vadd.f32 %v655, 1.0
    %v658 = vrcp.pop %v656
    %v659 = vmul.f32 1.0, %v658
    %v660 = vrcp.pop %v657
    %v661 = vmul.f32 1.0, %v660
    %v662 = vmul.f32 %v645, %v628
    %v663 = vmul.f32 %v647, %v631
    %v664 = vadd.f32 %v366, %v662
    %v665 = vadd.f32 %v369, %v663
    %v666 = vtanh.pop %v664
    %v667 = vtanh.pop %v665
    %v668 = vsub.f32 1.0, %v659
    %v669 = vsub.f32 1.0, %v661
    %v670 = vmul.f32 %v668, %v666
    %v671 = vmul.f32 %v669, %v667
    %v672 = vmul.f32 %v659, %v108
    %v673 = vmul.f32 %v661, %v109
    %v674 = vadd.f32 %v670, %v672
    %v675 = vadd.f32 %v671, %v673
    %676 = vst [vmem:[%s9] sm:$0xff] %v674
    %677 = vst [vmem:[%s9 + $0x8] sm:$0xff] %v675
    %s678 = scalar_lea.vmem %s9, 16
    %v679 = vld [vmem:[%s678] sm:$0xff]
    %v680 = vld [vmem:[%s678 + $0x8] sm:$0xff]
    %v681 = vpack.c.bf16 %v675, %v674
    %s682 = scalar_lea.vmem [#allocation2], 192
    %v683 = vld [vmem:[%s682] sm:$0xff]
    %v684 = vld [vmem:[%s682 + $0x8] sm:$0xf]
    %v685 = vld [vmem:[%s682 + $0xc] sm:$0xff]
    %v686 = vld [vmem:[%s682 + $0x14] sm:$0xf]
    %v687 = vld [vmem:[%s682 + $0x18] sm:$0xff]
    %v688 = vld [vmem:[%s682 + $0x20] sm:$0xf]
    %v689 = vld [vmem:[%s682 + $0x24] sm:$0xff]
    %v690 = vld [vmem:[%s682 + $0x2c] sm:$0xf]
    %v691 = vld [vmem:[%s682 + $0x30] sm:$0xff]
    %v692 = vld [vmem:[%s682 + $0x38] sm:$0xf]
    %v693 = vld [vmem:[%s682 + $0x3c] sm:$0xff]
    %v694 = vld [vmem:[%s682 + $0x44] sm:$0xf]
    %v695 = vld [vmem:[%s682 + $0x48] sm:$0xff]
    %v696 = vld [vmem:[%s682 + $0x50] sm:$0xf]
    %v697 = vld [vmem:[%s682 + $0x54] sm:$0xff]
    %v698 = vld [vmem:[%s682 + $0x5c] sm:$0xf]
    %v699 = vld [vmem:[%s682 + $0x60] sm:$0xff]
    %v700 = vld [vmem:[%s682 + $0x68] sm:$0xf]
    %v701 = vld [vmem:[%s682 + $0x6c] sm:$0xff]
    %v702 = vld [vmem:[%s682 + $0x74] sm:$0xf]
    %v703 = vld [vmem:[%s682 + $0x78] sm:$0xff]
    %v704 = vld [vmem:[%s682 + $0x80] sm:$0xf]
    %v705 = vld [vmem:[%s682 + $0x84] sm:$0xff]
    %v706 = vld [vmem:[%s682 + $0x8c] sm:$0xf]
    %v707 = vld [vmem:[%s682 + $0x90] sm:$0xff]
    %v708 = vld [vmem:[%s682 + $0x98] sm:$0xf]
    %v709 = vld [vmem:[%s682 + $0x9c] sm:$0xff]
    %v710 = vld [vmem:[%s682 + $0xa4] sm:$0xf]
    %v711 = vld [vmem:[%s682 + $0xa8] sm:$0xff]
    %v712 = vld [vmem:[%s682 + $0xb0] sm:$0xf]
    %v713 = vld [vmem:[%s682 + $0xb4] sm:$0xff]
    %v714 = vld [vmem:[%s682 + $0xbc] sm:$0xf]
    %s715 = scalar_lea.vmem %s3, 3
    %v716 = vld [vmem:[%s715] sm:$0x7]
    %v718 = vlaneseq
    %v719 = vshrl.u32 %v718, 7
    %v720 = vsub.s32 0, %v719
    %v721 = vrot.slane %v716, %v720
    %v722 = vlaneseq
    %v723 = vshrl.u32 %v722, 7
    %v724 = vsub.s32 1, %v723
    %v725 = vrot.slane %v716, %v724
    %v726 = vlaneseq
    %v727 = vshrl.u32 %v726, 7
    %v728 = vsub.s32 2, %v727
    %v729 = vrot.slane %v716, %v728
    %v765 = vunpack.c.l.b16 %v683
    %v766 = vunpack.c.h.b16 %v683
    %v767 = vunpack.c.l.b16 %v684
    %v768 = vunpack.c.l.b16 %v685
    %v769 = vunpack.c.h.b16 %v685
    %v770 = vunpack.c.l.b16 %v686
    %v771 = vunpack.c.l.b16 %v687
    %v772 = vunpack.c.h.b16 %v687
    %v773 = vunpack.c.l.b16 %v688
    %v774 = vunpack.c.l.b16 %v689
    %v775 = vunpack.c.h.b16 %v689
    %v776 = vunpack.c.l.b16 %v690
    %v777 = vunpack.c.l.b16 %v691
    %v778 = vunpack.c.h.b16 %v691
    %v779 = vunpack.c.l.b16 %v692
    %v780 = vunpack.c.l.b16 %v693
    %v781 = vunpack.c.h.b16 %v693
    %v782 = vunpack.c.l.b16 %v694
    %v783 = vunpack.c.l.b16 %v695
    %v784 = vunpack.c.h.b16 %v695
    %v785 = vunpack.c.l.b16 %v696
    %v786 = vunpack.c.l.b16 %v697
    %v787 = vunpack.c.h.b16 %v697
    %v788 = vunpack.c.l.b16 %v698
    %v789 = vunpack.c.l.b16 %v699
    %v790 = vunpack.c.h.b16 %v699
    %v791 = vunpack.c.l.b16 %v700
    %v792 = vunpack.c.l.b16 %v701
    %v793 = vunpack.c.h.b16 %v701
    %v794 = vunpack.c.l.b16 %v702
    %v795 = vunpack.c.l.b16 %v703
    %v796 = vunpack.c.h.b16 %v703
    %v797 = vunpack.c.l.b16 %v704
    %v798 = vunpack.c.l.b16 %v705
    %v799 = vunpack.c.h.b16 %v705
    %v800 = vunpack.c.l.b16 %v706
    %v801 = vunpack.c.l.b16 %v707
    %v802 = vunpack.c.h.b16 %v707
    %v803 = vunpack.c.l.b16 %v708
    %v804 = vunpack.c.l.b16 %v709
    %v805 = vunpack.c.h.b16 %v709
    %v806 = vunpack.c.l.b16 %v710
    %v807 = vunpack.c.l.b16 %v711
    %v808 = vunpack.c.h.b16 %v711
    %v809 = vunpack.c.l.b16 %v712
    %v810 = vunpack.c.l.b16 %v713
    %v811 = vunpack.c.h.b16 %v713
    %v812 = vunpack.c.l.b16 %v714
    %v813 = vpack.c.b16 %v768, %v765
    %v814 = vpack.c.b16 %v769, %v766
    %v815 = vpack.c.b16 %v770, %v767
    %v816 = vpack.c.b16 %v774, %v771
    %v817 = vpack.c.b16 %v775, %v772
    %v818 = vpack.c.b16 %v776, %v773
    %v819 = vpack.c.b16 %v780, %v777
    %v820 = vpack.c.b16 %v781, %v778
    %v821 = vpack.c.b16 %v782, %v779
    %v822 = vpack.c.b16 %v786, %v783
    %v823 = vpack.c.b16 %v787, %v784
    %v824 = vpack.c.b16 %v788, %v785
    %v825 = vpack.c.b16 %v792, %v789
    %v826 = vpack.c.b16 %v793, %v790
    %v827 = vpack.c.b16 %v794, %v791
    %v828 = vpack.c.b16 %v798, %v795
    %v829 = vpack.c.b16 %v799, %v796
    %v830 = vpack.c.b16 %v800, %v797
    %v831 = vpack.c.b16 %v804, %v801
    %v832 = vpack.c.b16 %v805, %v802
    %v833 = vpack.c.b16 %v806, %v803
    %v834 = vpack.c.b16 %v810, %v807
    %v835 = vpack.c.b16 %v811, %v808
    %v836 = vpack.c.b16 %v812, %v809
    %861 = vmatprep.subr.bf16.mxu0 %v835
    %862 = vmatpush1.bf16.msra.mxu0 %v834
    %863 = vmatprep.subr.bf16.mxu0 %v832
    %864 = vmatpush1.bf16.msra.mxu0 %v831
    %865 = vmatprep.subr.bf16.mxu0 %v829
    %866 = vmatpush1.bf16.msra.mxu0 %v828
    %867 = vmatprep.subr.bf16.mxu0 %v826
    %868 = vmatpush1.bf16.msra.mxu0 %v825
    %869 = vmatprep.subr.bf16.mxu0 %v823
    %870 = vmatpush1.bf16.msra.mxu0 %v822
    %871 = vmatprep.subr.bf16.mxu0 %v820
    %872 = vmatpush1.bf16.msra.mxu0 %v819
    %873 = vmatprep.subr.bf16.mxu0 %v817
    %874 = vmatpush1.bf16.msra.mxu0 %v816
    %875 = vmatprep.subr.bf16.mxu0 %v814
    %876 = vmatpush1.bf16.msra.mxu0 %v813
    %877 = vmatprep.subr.bf16.mxu0 0
    %878 = vmatpush2.bf16.msra.mxu0 0
    %879 = vmatprep.subr.bf16.mxu0 0
    %880 = vmatpush2.bf16.msra.mxu0 0
    %881 = vmatprep.subr.bf16.mxu0 0
    %882 = vmatpush2.bf16.msra.mxu0 0
    %883 = vmatprep.subr.bf16.mxu0 0
    %884 = vmatpush2.bf16.msra.mxu0 0
    %885 = vmatprep.subr.bf16.mxu0 0
    %886 = vmatpush2.bf16.msra.mxu0 0
    %887 = vmatprep.subr.bf16.mxu0 0
    %888 = vmatpush2.bf16.msra.mxu0 0
    %889 = vmatprep.subr.bf16.mxu0 0
    %890 = vmatpush2.bf16.msra.mxu0 0
    %891 = vmatprep.subr.bf16.mxu0 0
    %892 = vmatpush2.bf16.msra.mxu0 0
    %893 = vmatprep.mubr.bf16.mxu0 0
    %894 = vmatmul.mubr.bf16.gmra.mxu0 %v681
    %v895 = vpop.f32.mrf.mxu0
    %v896 = vadd.f32 %v721, %v895
    %v897 = vpop.f32.mrf.mxu0
    %v898 = vadd.f32 %v725, %v897
    %v899 = vpop.f32.mrf.mxu0
    %v900 = vadd.f32 %v721, %v899
    %v901 = vpop.f32.mrf.mxu0
    %v902 = vadd.f32 %v725, %v901
    %903 = vdwg.mxu0
    %904 = vmatprep.subr.bf16.mxu0 0
    %905 = vmatpush1.bf16.msra.mxu0 %v836
    %906 = vmatprep.subr.bf16.mxu0 0
    %907 = vmatpush1.bf16.msra.mxu0 %v833
    %908 = vmatprep.subr.bf16.mxu0 0
    %909 = vmatpush1.bf16.msra.mxu0 %v830
    %910 = vmatprep.subr.bf16.mxu0 0
    %911 = vmatpush1.bf16.msra.mxu0 %v827
    %912 = vmatprep.subr.bf16.mxu0 0
    %913 = vmatpush1.bf16.msra.mxu0 %v824
    %914 = vmatprep.subr.bf16.mxu0 0
    %915 = vmatpush1.bf16.msra.mxu0 %v821
    %916 = vmatprep.subr.bf16.mxu0 0
    %917 = vmatpush1.bf16.msra.mxu0 %v818
    %918 = vmatprep.subr.bf16.mxu0 0
    %919 = vmatpush1.bf16.msra.mxu0 %v815
    %920 = vmatprep.subr.bf16.mxu0 0
    %921 = vmatpush2.bf16.msra.mxu0 0
    %922 = vmatprep.subr.bf16.mxu0 0
    %923 = vmatpush2.bf16.msra.mxu0 0
    %924 = vmatprep.subr.bf16.mxu0 0
    %925 = vmatpush2.bf16.msra.mxu0 0
    %926 = vmatprep.subr.bf16.mxu0 0
    %927 = vmatpush2.bf16.msra.mxu0 0
    %928 = vmatprep.subr.bf16.mxu0 0
    %929 = vmatpush2.bf16.msra.mxu0 0
    %930 = vmatprep.subr.bf16.mxu0 0
    %931 = vmatpush2.bf16.msra.mxu0 0
    %932 = vmatprep.subr.bf16.mxu0 0
    %933 = vmatpush2.bf16.msra.mxu0 0
    %934 = vmatprep.subr.bf16.mxu0 0
    %935 = vmatpush2.bf16.msra.mxu0 0
    %936 = vmatprep.mubr.bf16.mxu0 0
    %937 = vmatmul.mubr.bf16.gmra.mxu0 %v681
    %v938 = vpop.f32.mrf.mxu0
    %v939 = vadd.f32 %v729, %v938
    %v940 = vpop.f32.mrf.mxu0
    %v941 = vpop.f32.mrf.mxu0
    %v942 = vadd.f32 %v729, %v941
    %v943 = vpop.f32.mrf.mxu0
    %944 = vdwg.mxu0
    %v945 = vpack.c.bf16 %v680, %v679
    %s946 = scalar_lea.vmem [#allocation4], 192
    %v947 = vld [vmem:[%s946] sm:$0xff]
    %v948 = vld [vmem:[%s946 + $0x8] sm:$0xf]
    %v949 = vld [vmem:[%s946 + $0xc] sm:$0xff]
    %v950 = vld [vmem:[%s946 + $0x14] sm:$0xf]
    %v951 = vld [vmem:[%s946 + $0x18] sm:$0xff]
    %v952 = vld [vmem:[%s946 + $0x20] sm:$0xf]
    %v953 = vld [vmem:[%s946 + $0x24] sm:$0xff]
    %v954 = vld [vmem:[%s946 + $0x2c] sm:$0xf]
    %v955 = vld [vmem:[%s946 + $0x30] sm:$0xff]
    %v956 = vld [vmem:[%s946 + $0x38] sm:$0xf]
    %v957 = vld [vmem:[%s946 + $0x3c] sm:$0xff]
    %v958 = vld [vmem:[%s946 + $0x44] sm:$0xf]
    %v959 = vld [vmem:[%s946 + $0x48] sm:$0xff]
    %v960 = vld [vmem:[%s946 + $0x50] sm:$0xf]
    %v961 = vld [vmem:[%s946 + $0x54] sm:$0xff]
    %v962 = vld [vmem:[%s946 + $0x5c] sm:$0xf]
    %v963 = vld [vmem:[%s946 + $0x60] sm:$0xff]
    %v964 = vld [vmem:[%s946 + $0x68] sm:$0xf]
    %v965 = vld [vmem:[%s946 + $0x6c] sm:$0xff]
    %v966 = vld [vmem:[%s946 + $0x74] sm:$0xf]
    %v967 = vld [vmem:[%s946 + $0x78] sm:$0xff]
    %v968 = vld [vmem:[%s946 + $0x80] sm:$0xf]
    %v969 = vld [vmem:[%s946 + $0x84] sm:$0xff]
    %v970 = vld [vmem:[%s946 + $0x8c] sm:$0xf]
    %v971 = vld [vmem:[%s946 + $0x90] sm:$0xff]
    %v972 = vld [vmem:[%s946 + $0x98] sm:$0xf]
    %v973 = vld [vmem:[%s946 + $0x9c] sm:$0xff]
    %v974 = vld [vmem:[%s946 + $0xa4] sm:$0xf]
    %v975 = vld [vmem:[%s946 + $0xa8] sm:$0xff]
    %v976 = vld [vmem:[%s946 + $0xb0] sm:$0xf]
    %v977 = vld [vmem:[%s946 + $0xb4] sm:$0xff]
    %v978 = vld [vmem:[%s946 + $0xbc] sm:$0xf]
    %s979 = scalar_lea.vmem %s4, 3
    %v980 = vld [vmem:[%s979] sm:$0x7]
    %v982 = vlaneseq
    %v983 = vshrl.u32 %v982, 7
    %v984 = vsub.s32 0, %v983
    %v985 = vrot.slane %v980, %v984
    %v986 = vlaneseq
    %v987 = vshrl.u32 %v986, 7
    %v988 = vsub.s32 1, %v987
    %v989 = vrot.slane %v980, %v988
    %v990 = vlaneseq
    %v991 = vshrl.u32 %v990, 7
    %v992 = vsub.s32 2, %v991
    %v993 = vrot.slane %v980, %v992
    %v1029 = vunpack.c.l.b16 %v947
    %v1030 = vunpack.c.h.b16 %v947
    %v1031 = vunpack.c.l.b16 %v948
    %v1032 = vunpack.c.l.b16 %v949
    %v1033 = vunpack.c.h.b16 %v949
    %v1034 = vunpack.c.l.b16 %v950
    %v1035 = vunpack.c.l.b16 %v951
    %v1036 = vunpack.c.h.b16 %v951
    %v1037 = vunpack.c.l.b16 %v952
    %v1038 = vunpack.c.l.b16 %v953
    %v1039 = vunpack.c.h.b16 %v953
    %v1040 = vunpack.c.l.b16 %v954
    %v1041 = vunpack.c.l.b16 %v955
    %v1042 = vunpack.c.h.b16 %v955
    %v1043 = vunpack.c.l.b16 %v956
    %v1044 = vunpack.c.l.b16 %v957
    %v1045 = vunpack.c.h.b16 %v957
    %v1046 = vunpack.c.l.b16 %v958
    %v1047 = vunpack.c.l.b16 %v959
    %v1048 = vunpack.c.h.b16 %v959
    %v1049 = vunpack.c.l.b16 %v960
    %v1050 = vunpack.c.l.b16 %v961
    %v1051 = vunpack.c.h.b16 %v961
    %v1052 = vunpack.c.l.b16 %v962
    %v1053 = vunpack.c.l.b16 %v963
    %v1054 = vunpack.c.h.b16 %v963
    %v1055 = vunpack.c.l.b16 %v964
    %v1056 = vunpack.c.l.b16 %v965
    %v1057 = vunpack.c.h.b16 %v965
    %v1058 = vunpack.c.l.b16 %v966
    %v1059 = vunpack.c.l.b16 %v967
    %v1060 = vunpack.c.h.b16 %v967
    %v1061 = vunpack.c.l.b16 %v968
    %v1062 = vunpack.c.l.b16 %v969
    %v1063 = vunpack.c.h.b16 %v969
    %v1064 = vunpack.c.l.b16 %v970
    %v1065 = vunpack.c.l.b16 %v971
    %v1066 = vunpack.c.h.b16 %v971
    %v1067 = vunpack.c.l.b16 %v972
    %v1068 = vunpack.c.l.b16 %v973
    %v1069 = vunpack.c.h.b16 %v973
    %v1070 = vunpack.c.l.b16 %v974
    %v1071 = vunpack.c.l.b16 %v975
    %v1072 = vunpack.c.h.b16 %v975
    %v1073 = vunpack.c.l.b16 %v976
    %v1074 = vunpack.c.l.b16 %v977
    %v1075 = vunpack.c.h.b16 %v977
    %v1076 = vunpack.c.l.b16 %v978
    %v1077 = vpack.c.b16 %v1032, %v1029
    %v1078 = vpack.c.b16 %v1033, %v1030
    %v1079 = vpack.c.b16 %v1034, %v1031
    %v1080 = vpack.c.b16 %v1038, %v1035
    %v1081 = vpack.c.b16 %v1039, %v1036
    %v1082 = vpack.c.b16 %v1040, %v1037
    %v1083 = vpack.c.b16 %v1044, %v1041
    %v1084 = vpack.c.b16 %v1045, %v1042
    %v1085 = vpack.c.b16 %v1046, %v1043
    %v1086 = vpack.c.b16 %v1050, %v1047
    %v1087 = vpack.c.b16 %v1051, %v1048
    %v1088 = vpack.c.b16 %v1052, %v1049
    %v1089 = vpack.c.b16 %v1056, %v1053
    %v1090 = vpack.c.b16 %v1057, %v1054
    %v1091 = vpack.c.b16 %v1058, %v1055
    %v1092 = vpack.c.b16 %v1062, %v1059
    %v1093 = vpack.c.b16 %v1063, %v1060
    %v1094 = vpack.c.b16 %v1064, %v1061
    %v1095 = vpack.c.b16 %v1068, %v1065
    %v1096 = vpack.c.b16 %v1069, %v1066
    %v1097 = vpack.c.b16 %v1070, %v1067
    %v1098 = vpack.c.b16 %v1074, %v1071
    %v1099 = vpack.c.b16 %v1075, %v1072
    %v1100 = vpack.c.b16 %v1076, %v1073
    %1125 = vmatprep.subr.bf16.mxu0 %v1099
    %1126 = vmatpush1.bf16.msra.mxu0 %v1098
    %1127 = vmatprep.subr.bf16.mxu0 %v1096
    %1128 = vmatpush1.bf16.msra.mxu0 %v1095
    %1129 = vmatprep.subr.bf16.mxu0 %v1093
    %1130 = vmatpush1.bf16.msra.mxu0 %v1092
    %1131 = vmatprep.subr.bf16.mxu0 %v1090
    %1132 = vmatpush1.bf16.msra.mxu0 %v1089
    %1133 = vmatprep.subr.bf16.mxu0 %v1087
    %1134 = vmatpush1.bf16.msra.mxu0 %v1086
    %1135 = vmatprep.subr.bf16.mxu0 %v1084
    %1136 = vmatpush1.bf16.msra.mxu0 %v1083
    %1137 = vmatprep.subr.bf16.mxu0 %v1081
    %1138 = vmatpush1.bf16.msra.mxu0 %v1080
    %1139 = vmatprep.subr.bf16.mxu0 %v1078
    %1140 = vmatpush1.bf16.msra.mxu0 %v1077
    %1141 = vmatprep.subr.bf16.mxu0 0
    %1142 = vmatpush2.bf16.msra.mxu0 0
    %1143 = vmatprep.subr.bf16.mxu0 0
    %1144 = vmatpush2.bf16.msra.mxu0 0
    %1145 = vmatprep.subr.bf16.mxu0 0
    %1146 = vmatpush2.bf16.msra.mxu0 0
    %1147 = vmatprep.subr.bf16.mxu0 0
    %1148 = vmatpush2.bf16.msra.mxu0 0
    %1149 = vmatprep.subr.bf16.mxu0 0
    %1150 = vmatpush2.bf16.msra.mxu0 0
    %1151 = vmatprep.subr.bf16.mxu0 0
    %1152 = vmatpush2.bf16.msra.mxu0 0
    %1153 = vmatprep.subr.bf16.mxu0 0
    %1154 = vmatpush2.bf16.msra.mxu0 0
    %1155 = vmatprep.subr.bf16.mxu0 0
    %1156 = vmatpush2.bf16.msra.mxu0 0
    %1157 = vmatprep.mubr.bf16.mxu0 0
    %1158 = vmatmul.mubr.bf16.gmra.mxu0 %v945
    %v1159 = vpop.f32.mrf.mxu0
    %v1160 = vadd.f32 %v985, %v1159
    %v1161 = vpop.f32.mrf.mxu0
    %v1162 = vadd.f32 %v989, %v1161
    %v1163 = vpop.f32.mrf.mxu0
    %v1164 = vadd.f32 %v985, %v1163
    %v1165 = vpop.f32.mrf.mxu0
    %v1166 = vadd.f32 %v989, %v1165
    %1167 = vdwg.mxu0
    %1168 = vmatprep.subr.bf16.mxu0 0
    %1169 = vmatpush1.bf16.msra.mxu0 %v1100
    %1170 = vmatprep.subr.bf16.mxu0 0
    %1171 = vmatpush1.bf16.msra.mxu0 %v1097
    %1172 = vmatprep.subr.bf16.mxu0 0
    %1173 = vmatpush1.bf16.msra.mxu0 %v1094
    %1174 = vmatprep.subr.bf16.mxu0 0
    %1175 = vmatpush1.bf16.msra.mxu0 %v1091
    %1176 = vmatprep.subr.bf16.mxu0 0
    %1177 = vmatpush1.bf16.msra.mxu0 %v1088
    %1178 = vmatprep.subr.bf16.mxu0 0
    %1179 = vmatpush1.bf16.msra.mxu0 %v1085
    %1180 = vmatprep.subr.bf16.mxu0 0
    %1181 = vmatpush1.bf16.msra.mxu0 %v1082
    %1182 = vmatprep.subr.bf16.mxu0 0
    %1183 = vmatpush1.bf16.msra.mxu0 %v1079
    %1184 = vmatprep.subr.bf16.mxu0 0
    %1185 = vmatpush2.bf16.msra.mxu0 0
    %1186 = vmatprep.subr.bf16.mxu0 0
    %1187 = vmatpush2.bf16.msra.mxu0 0
    %1188 = vmatprep.subr.bf16.mxu0 0
    %1189 = vmatpush2.bf16.msra.mxu0 0
    %1190 = vmatprep.subr.bf16.mxu0 0
    %1191 = vmatpush2.bf16.msra.mxu0 0
    %1192 = vmatprep.subr.bf16.mxu0 0
    %1193 = vmatpush2.bf16.msra.mxu0 0
    %1194 = vmatprep.subr.bf16.mxu0 0
    %1195 = vmatpush2.bf16.msra.mxu0 0
    %1196 = vmatprep.subr.bf16.mxu0 0
    %1197 = vmatpush2.bf16.msra.mxu0 0
    %1198 = vmatprep.subr.bf16.mxu0 0
    %1199 = vmatpush2.bf16.msra.mxu0 0
    %1200 = vmatprep.mubr.bf16.mxu0 0
    %1201 = vmatmul.mubr.bf16.gmra.mxu0 %v945
    %v1202 = vpop.f32.mrf.mxu0
    %v1203 = vadd.f32 %v993, %v1202
    %v1204 = vpop.f32.mrf.mxu0
    %v1205 = vpop.f32.mrf.mxu0
    %v1206 = vadd.f32 %v993, %v1205
    %v1207 = vpop.f32.mrf.mxu0
    %1208 = vdwg.mxu0
    %v1209 = vadd.f32 %v896, %v1160
    %v1210 = vadd.f32 %v900, %v1164
    %v1211 = vxor.u32 %v1209, 2147483648
    %v1212 = vxor.u32 %v1210, 2147483648
    %v1213 = vmul.f32 %v1211, 1.442695
    %v1214 = vpow.pop %v1213
    %v1215 = vmul.f32 %v1212, 1.442695
    %v1216 = vpow.pop %v1215
    %v1217 = vadd.f32 %v1214, 1.0
    %v1218 = vadd.f32 %v1216, 1.0
    %v1219 = vrcp.pop %v1217
    %v1220 = vmul.f32 1.0, %v1219
    %v1221 = vrcp.pop %v1218
    %v1222 = vmul.f32 1.0, %v1221
    %v1223 = vadd.f32 %v898, %v1162
    %v1224 = vadd.f32 %v902, %v1166
    %v1225 = vxor.u32 %v1223, 2147483648
    %v1226 = vxor.u32 %v1224, 2147483648
    %v1227 = vmul.f32 %v1225, 1.442695
    %v1228 = vpow.pop %v1227
    %v1229 = vmul.f32 %v1226, 1.442695
    %v1230 = vpow.pop %v1229
    %v1231 = vadd.f32 %v1228, 1.0
    %v1232 = vadd.f32 %v1230, 1.0
    %v1233 = vrcp.pop %v1231
    %v1234 = vmul.f32 1.0, %v1233
    %v1235 = vrcp.pop %v1232
    %v1236 = vmul.f32 1.0, %v1235
    %v1237 = vmul.f32 %v1220, %v1203
    %v1238 = vmul.f32 %v1222, %v1206
    %v1239 = vadd.f32 %v939, %v1237
    %v1240 = vadd.f32 %v942, %v1238
    %v1241 = vtanh.pop %v1239
    %v1242 = vtanh.pop %v1240
    %v1243 = vsub.f32 1.0, %v1234
    %v1244 = vsub.f32 1.0, %v1236
    %v1245 = vmul.f32 %v1243, %v1241
    %v1246 = vmul.f32 %v1244, %v1242
    %v1247 = vmul.f32 %v1234, %v679
    %v1248 = vmul.f32 %v1236, %v680
    %v1249 = vadd.f32 %v1245, %v1247
    %v1250 = vadd.f32 %v1246, %v1248
    %1251 = vst [vmem:[%s678] sm:$0xff] %v1249
    %1252 = vst [vmem:[%s678 + $0x8] sm:$0xff] %v1250
    %v1253 = vpack.c.bf16 %v1250, %v1249
    %v1254 = vld [vmem:[%s5] sm:$0xf]
    %v1255 = vld [vmem:[%s5 + $0x4] sm:$0xf]
    %v1256 = vld [vmem:[%s5 + $0x8] sm:$0xf]
    %v1257 = vld [vmem:[%s5 + $0xc] sm:$0xf]
    %v1258 = vld [vmem:[%s5 + $0x10] sm:$0xf]
    %v1259 = vld [vmem:[%s5 + $0x14] sm:$0xf]
    %v1260 = vld [vmem:[%s5 + $0x18] sm:$0xf]
    %v1261 = vld [vmem:[%s5 + $0x1c] sm:$0xf]
    %v1262 = vld [vmem:[%s5 + $0x20] sm:$0xf]
    %v1263 = vld [vmem:[%s5 + $0x24] sm:$0xf]
    %v1264 = vld [vmem:[%s5 + $0x28] sm:$0xf]
    %v1265 = vld [vmem:[%s5 + $0x2c] sm:$0xf]
    %v1266 = vld [vmem:[%s5 + $0x30] sm:$0xf]
    %v1267 = vld [vmem:[%s5 + $0x34] sm:$0xf]
    %v1268 = vld [vmem:[%s5 + $0x38] sm:$0xf]
    %v1269 = vld [vmem:[%s5 + $0x3c] sm:$0xf]
    %v1270 = vld [vmem:[%s6] sm:$0x1]
    %v1272 = vlaneseq
    %v1273 = vshrl.u32 %v1272, 7
    %v1274 = vsub.s32 0, %v1273
    %v1275 = vrot.slane %v1270, %v1274
    %v1293 = vunpack.c.l.b16 %v1254
    %v1294 = vunpack.c.l.b16 %v1255
    %v1295 = vunpack.c.l.b16 %v1256
    %v1296 = vunpack.c.l.b16 %v1257
    %v1297 = vunpack.c.l.b16 %v1258
    %v1298 = vunpack.c.l.b16 %v1259
    %v1299 = vunpack.c.l.b16 %v1260
    %v1300 = vunpack.c.l.b16 %v1261
    %v1301 = vunpack.c.l.b16 %v1262
    %v1302 = vunpack.c.l.b16 %v1263
    %v1303 = vunpack.c.l.b16 %v1264
    %v1304 = vunpack.c.l.b16 %v1265
    %v1305 = vunpack.c.l.b16 %v1266
    %v1306 = vunpack.c.l.b16 %v1267
    %v1307 = vunpack.c.l.b16 %v1268
    %v1308 = vunpack.c.l.b16 %v1269
    %v1309 = vpack.c.b16 %v1294, %v1293
    %v1310 = vpack.c.b16 %v1296, %v1295
    %v1311 = vpack.c.b16 %v1298, %v1297
    %v1312 = vpack.c.b16 %v1300, %v1299
    %v1313 = vpack.c.b16 %v1302, %v1301
    %v1314 = vpack.c.b16 %v1304, %v1303
    %v1315 = vpack.c.b16 %v1306, %v1305
    %v1316 = vpack.c.b16 %v1308, %v1307
    %1325 = vmatprep.subr.bf16.mxu0 0
    %1326 = vmatpush1.bf16.msra.mxu0 %v1316
    %1327 = vmatprep.subr.bf16.mxu0 0
    %1328 = vmatpush1.bf16.msra.mxu0 %v1315
    %1329 = vmatprep.subr.bf16.mxu0 0
    %1330 = vmatpush1.bf16.msra.mxu0 %v1314
    %1331 = vmatprep.subr.bf16.mxu0 0
    %1332 = vmatpush1.bf16.msra.mxu0 %v1313
    %1333 = vmatprep.subr.bf16.mxu0 0
    %1334 = vmatpush1.bf16.msra.mxu0 %v1312
    %1335 = vmatprep.subr.bf16.mxu0 0
    %1336 = vmatpush1.bf16.msra.mxu0 %v1311
    %1337 = vmatprep.subr.bf16.mxu0 0
    %1338 = vmatpush1.bf16.msra.mxu0 %v1310
    %1339 = vmatprep.subr.bf16.mxu0 0
    %1340 = vmatpush1.bf16.msra.mxu0 %v1309
    %1341 = vmatprep.subr.bf16.mxu0 0
    %1342 = vmatpush2.bf16.msra.mxu0 0
    %1343 = vmatprep.subr.bf16.mxu0 0
    %1344 = vmatpush2.bf16.msra.mxu0 0
    %1345 = vmatprep.subr.bf16.mxu0 0
    %1346 = vmatpush2.bf16.msra.mxu0 0
    %1347 = vmatprep.subr.bf16.mxu0 0
    %1348 = vmatpush2.bf16.msra.mxu0 0
    %1349 = vmatprep.subr.bf16.mxu0 0
    %1350 = vmatpush2.bf16.msra.mxu0 0
    %1351 = vmatprep.subr.bf16.mxu0 0
    %1352 = vmatpush2.bf16.msra.mxu0 0
    %1353 = vmatprep.subr.bf16.mxu0 0
    %1354 = vmatpush2.bf16.msra.mxu0 0
    %1355 = vmatprep.subr.bf16.mxu0 0
    %1356 = vmatpush2.bf16.msra.mxu0 0
    %1357 = vmatprep.mubr.bf16.mxu0 0
    %1358 = vmatmul.mubr.bf16.gmra.mxu0 %v1253
    %v1359 = vpop.f32.mrf.mxu0
    %v1360 = vadd.f32 %v1275, %v1359
    %v1361 = vpop.f32.mrf.mxu0
    %v1362 = vpop.f32.mrf.mxu0
    %v1363 = vadd.f32 %v1275, %v1362
    %v1364 = vpop.f32.mrf.mxu0
    %1365 = vdwg.mxu0
    %1366 = vmax.xlane.f32.xlu0 %v1360
    %v1367 = vpop.xlane.xlu0 %1366
    %1368 = vmax.xlane.f32.xlu0 %v1363
    %v1369 = vpop.xlane.xlu0 %1368
    %v1370 = vsub.f32 %v1360, %v1367
    %v1371 = vsub.f32 %v1363, %v1369
    %v1372 = vmul.f32 %v1370, 1.442695
    %v1373 = vpow.pop %v1372
    %v1374 = vmul.f32 %v1371, 1.442695
    %v1375 = vpow.pop %v1374
    %1376 = vadd.xlane.f32.xlu0 %v1373
    %v1377 = vpop.xlane.xlu0 %1376
    %1378 = vadd.xlane.f32.xlu0 %v1375
    %v1379 = vpop.xlane.xlu0 %1378
    %v1380 = vlog2.pop %v1377
    %v1381 = vmul.f32 %v1380, 0.6931472
    %v1382 = vlog2.pop %v1379
    %v1383 = vmul.f32 %v1382, 0.6931472
    %v1384 = vsub.f32 %v1370, %v1381
    %v1385 = vsub.f32 %v1371, %v1383
    %1386 = vst [vmem:[%s8] sm:$0xff] %v1384
    %1387 = vst [vmem:[%s8 + $0x8] sm:$0xff] %v1385
    // Predicated region
    $region46: #{rnn_de_forward.1} parent=1 // pred_check
      _
    $region47: #{rnn_de_forward.1} parent=1 // pred_check_branch
      %1389 = sbr.rel (0) target = $region49
    $region48: #{rnn_de_forward.1} parent=1 // pred_region
      _
    $region49: #{rnn_de_forward.1} parent=1 // pred_fallthru
      _
    // Predicated region
    $region50: #{rnn_de_forward.1} parent=1 // pred_check
      _
    $region51: #{rnn_de_forward.1} parent=1 // pred_check_branch
      %1391 = sbr.rel (0) target = $region53
    $region52: #{rnn_de_forward.1} parent=1 // pred_region
      _
    $region53: #{rnn_de_forward.1} parent=1 // pred_fallthru
      _
    // Predicated region
    $region54: #{rnn_de_forward.1} parent=1 // pred_check
      _
    $region55: #{rnn_de_forward.1} parent=1 // pred_check_branch
      %1393 = sbr.rel (0) target = $region57
    $region56: #{rnn_de_forward.1} parent=1 // pred_region
      _
    $region57: #{rnn_de_forward.1} parent=1 // pred_fallthru
      _
    // Predicated region
    $region58: #{rnn_de_forward.1} parent=1 // pred_check
      _
    $region59: #{rnn_de_forward.1} parent=1 // pred_check_branch
      %1395 = sbr.rel (0) target = $region61
    $region60: #{rnn_de_forward.1} parent=1 // pred_region
      _
    $region61: #{rnn_de_forward.1} parent=1 // pred_fallthru
      _
    %1396 = vsyncpa [#allocation3], 1
    %1397 = vsyncpa [#allocation5], 1

</llo_original>
